<compile_context>
chip_gen: v7x
topology: tpu7x:2x2x1
jax: 0.10.0
libtpu: 0.0.40
codegen_flags: <defaults>
</compile_context>

<pallas_src>
import math

import jax
import jax.numpy as jnp
from jax.experimental import pallas as pl
from jax.experimental.pallas import tpu as pltpu

# ---------------- synthetic BERT config (small) ----------------
HIDDEN = 32
NHEADS = 2
HEAD = HIDDEN // NHEADS
FFN = 64
NLAYERS = 2          # CHANNELS = NLAYERS + 1 hidden states (embeddings + each layer)
VOCAB = 64
MAXPOS = 32          # max_position_embeddings
LN_EPS = 1e-12
CLS_ID = 1           # synthetic tokenizer.vocab['[CLS]']
SEP_ID = 2           # synthetic tokenizer.vocab['[SEP]']

# MXU operand dtype: bf16 operands + f32 accumulation is optimal on v6e/v7x and fine
# on v5e (elementwise math below is kept in f32, which v5e's VPU/EUP require).
MXU_DTYPE = jnp.bfloat16


# ---------------- in-kernel helpers (pure array math, f32) ----------------
def _ln(x, g, b):
    mu = jnp.mean(x, axis=-1, keepdims=True)
    xc = x - mu
    var = jnp.mean(xc * xc, axis=-1, keepdims=True)
    return xc * jax.lax.rsqrt(var + LN_EPS) * g + b


def _gelu(x):
    # TODO(synk): HF BERT uses exact erf-GELU; tanh approximation used here.
    return 0.5 * x * (1.0 + jnp.tanh(0.7978845608028654 * (x + 0.044715 * x * x * x)))


def _mm(a, b):
    return jnp.dot(a.astype(MXU_DTYPE), b.astype(MXU_DTYPE),
                   preferred_element_type=jnp.float32)


# ---------------- fused transformer-layer Pallas kernel ----------------
def _layer_kernel(x_ref, bias_ref, wqkv_ref, bqkv_ref, wo_ref, bo_ref, ln1_ref,
                  w1_ref, b1_ref, w2_ref, b2_ref, ln2_ref, o_ref):
    x = x_ref[0]                       # [S, H] f32 for one batch element
    bias = bias_ref[0]                 # [1, S] additive attention mask
    scale = 1.0 / math.sqrt(HEAD)

    # fused Q/K/V projection: one MXU pass with N = 3*H
    qkv = _mm(x, wqkv_ref[...]) + bqkv_ref[...]          # [S, 3H]

    # multi-head attention + output projection (accumulated per head, no concat,
    # no transposes: dot_general contracts the last axes of q and k directly)
    attn_out = jnp.zeros_like(x)                          # [S, H] f32
    for hd in range(NHEADS):
        lo = hd * HEAD
        qh = qkv[:, lo:lo + HEAD]                         # [S, Dh]
        kh = qkv[:, HIDDEN + lo:HIDDEN + lo + HEAD]
        vh = qkv[:, 2 * HIDDEN + lo:2 * HIDDEN + lo + HEAD]
        s = jax.lax.dot_general(
            qh.astype(MXU_DTYPE), kh.astype(MXU_DTYPE),
            (((1,), (1,)), ((), ())),
            preferred_element_type=jnp.float32) * scale + bias   # [S, S]
        m = jnp.max(s, axis=-1, keepdims=True)
        p = jnp.exp(s - m)
        p = p * pl.reciprocal(jnp.sum(p, axis=-1, keepdims=True), approx=True)
        ctx_h = _mm(p, vh)                                # [S, Dh]
        # fold the output projection per head: ctx @ Wo == sum_h ctx_h @ Wo[h-rows]
        attn_out = attn_out + _mm(ctx_h, wo_ref[lo:lo + HEAD, :])
    attn_out = attn_out + bo_ref[...]

    ln1 = ln1_ref[...]
    h1 = _ln(x + attn_out, ln1[0:1, :], ln1[1:2, :])      # [S, H]

    ff = _gelu(_mm(h1, w1_ref[...]) + b1_ref[...])        # [S, FFN]
    ff = _mm(ff, w2_ref[...]) + b2_ref[...]               # [S, H]

    ln2 = ln2_ref[...]
    o_ref[0] = _ln(h1 + ff, ln2[0:1, :], ln2[1:2, :])


def transformer_layer(h, bias, lyr):
    B, S, H = h.shape
    xspec = pl.BlockSpec((1, S, H), lambda b: (b, 0, 0))
    bspec = pl.BlockSpec((1, 1, S), lambda b: (b, 0, 0))   # bias shared by all heads

    def wspec(arr):
        nd = arr.ndim
        return pl.BlockSpec(arr.shape, lambda b, _nd=nd: (0,) * _nd)  # VMEM-resident

    w_order = ("wqkv", "bqkv", "wo", "bo", "ln1", "w1", "b1", "w2", "b2", "ln2")
    return pl.pallas_call(
        _layer_kernel,
        grid=(B,),
        in_specs=[xspec, bspec] + [wspec(lyr[k]) for k in w_order],
        out_specs=xspec,
        out_shape=jax.ShapeDtypeStruct((B, S, H), jnp.float32),
        compiler_params=pltpu.CompilerParams(dimension_semantics=("parallel",)),
    )(h, bias, *[lyr[k] for k in w_order])


# ---------------- embedding LayerNorm kernel (gridded over batch) ----------------
def _emb_ln_kernel(x_ref, gb_ref, o_ref):
    gb = gb_ref[...]
    o_ref[0] = _ln(x_ref[0], gb[0:1, :], gb[1:2, :])


def emb_layernorm(x, gb):
    B, S, H = x.shape
    xspec = pl.BlockSpec((1, S, H), lambda b: (b, 0, 0))
    return pl.pallas_call(
        _emb_ln_kernel,
        grid=(B,),
        in_specs=[xspec, pl.BlockSpec((2, H), lambda b: (0, 0))],
        out_specs=xspec,
        out_shape=jax.ShapeDtypeStruct((B, S, H), jnp.float32),
        compiler_params=pltpu.CompilerParams(dimension_semantics=("parallel",)),
    )(x, gb)


# ---------------- deterministic synthetic parameters (packed layout) ----------------
def init_params(key):
    keys = iter(jax.random.split(key, 64))

    def w(shape):
        return 0.02 * jax.random.normal(next(keys), shape, jnp.float32)

    ones = jnp.ones((HIDDEN,), jnp.float32)
    zeros = jnp.zeros((HIDDEN,), jnp.float32)
    params = {
        "tok_emb": w((VOCAB, HIDDEN)),
        "pos_emb": w((MAXPOS, HIDDEN)),
        "type_emb": w((2, HIDDEN)),
        "emb_ln": jnp.stack([ones, zeros]),                       # [2, H] (gamma, beta)
        "layers": [],
    }
    for _ in range(NLAYERS):
        params["layers"].append({
            # Q/K/V weights fused into one [H, 3H] matrix (one MXU pass per layer).
            "wqkv": jnp.concatenate(
                [w((HIDDEN, HIDDEN)), w((HIDDEN, HIDDEN)), w((HIDDEN, HIDDEN))], axis=1),
            "bqkv": jnp.zeros((1, 3 * HIDDEN), jnp.float32),
            "wo": w((HIDDEN, HIDDEN)), "bo": jnp.zeros((1, HIDDEN), jnp.float32),
            "ln1": jnp.stack([ones, zeros]),
            "w1": w((HIDDEN, FFN)), "b1": jnp.zeros((1, FFN), jnp.float32),
            "w2": w((FFN, HIDDEN)), "b2": jnp.zeros((1, HIDDEN), jnp.float32),
            "ln2": jnp.stack([ones, zeros]),
        })
    return params


# ---------------- BERT encoder (output_hidden_states=True) ----------------
def bert_forward(params, tok, mask, seg):
    """Returns the list of (NLAYERS + 1) hidden states, each [B, S, HIDDEN]."""
    B, S = tok.shape
    x = (jnp.take(params["tok_emb"], tok, axis=0)
         + params["pos_emb"][None, :S, :]
         + jnp.take(params["type_emb"], seg, axis=0))
    h = emb_layernorm(x.astype(jnp.float32), params["emb_ln"])
    hidden_states = [h]

    # additive attention mask, kept un-broadcast at [B, 1, S]
    bias = ((1.0 - mask.astype(jnp.float32)) * -1e4)[:, None, :]

    for lyr in params["layers"]:
        h = transformer_layer(h, bias, lyr)
        hidden_states.append(h)
    return hidden_states


# ---------------- modeling_util.subbatch / un_subbatch (glue) ----------------
def subbatch(toks, maxlen):
    _, DLEN = toks.shape
    SUBBATCH = math.ceil(DLEN / maxlen)
    S = math.ceil(DLEN / SUBBATCH)
    if SUBBATCH == 1:
        return toks, SUBBATCH
    stack = []
    for s in range(SUBBATCH):
        piece = toks[:, s * S:(s + 1) * S]
        pad = S - piece.shape[1]
        if pad:
            piece = jnp.pad(piece, ((0, 0), (0, pad)))
        stack.append(piece)
    return jnp.concatenate(stack, axis=0), SUBBATCH


def un_subbatch(embed, toks, maxlen):
    B, DLEN = toks.shape
    SUBBATCH = math.ceil(DLEN / maxlen)
    if SUBBATCH == 1:
        return embed
    pieces = [embed[s * B:(s + 1) * B] for s in range(SUBBATCH)]
    out = jnp.concatenate(pieces, axis=1)
    return out[:, :DLEN]


# ---------------- BertRanker.encode_bert ----------------
def encode_bert(params, query_tok, query_mask, doc_tok, doc_mask):
    BATCH, QLEN = query_tok.shape
    DIFF = 3
    maxlen = MAXPOS
    MAX_DOC_TOK_LEN = maxlen - QLEN - DIFF

    doc_toks, sbcount = subbatch(doc_tok, MAX_DOC_TOK_LEN)
    doc_mask_s, _ = subbatch(doc_mask, MAX_DOC_TOK_LEN)
    query_toks = jnp.concatenate([query_tok] * sbcount, axis=0)
    query_mask_s = jnp.concatenate([query_mask] * sbcount, axis=0)

    CLSS = jnp.full_like(query_toks[:, :1], CLS_ID)
    SEPS = jnp.full_like(query_toks[:, :1], SEP_ID)
    ONES = jnp.ones_like(query_mask_s[:, :1])
    NILS = jnp.zeros_like(query_mask_s[:, :1])

    toks = jnp.concatenate([CLSS, query_toks, SEPS, doc_toks, SEPS], axis=1)
    mask = jnp.concatenate([ONES, query_mask_s, ONES, doc_mask_s, ONES], axis=1)
    segment_ids = jnp.concatenate(
        [NILS] * (2 + QLEN) + [ONES] * (1 + doc_toks.shape[1]), axis=1).astype(jnp.int32)
    toks = jnp.where(toks == -1, 0, toks)

    result = bert_forward(params, toks, mask, segment_ids)   # list of [sb*B, S, H]

    query_results = [r[:BATCH, 1:QLEN + 1] for r in result]
    doc_results = [r[:, QLEN + 2:-1] for r in result]
    doc_results = [un_subbatch(r, doc_tok, MAX_DOC_TOK_LEN) for r in doc_results]

    # per-subbatch [CLS] mean — tiny [SUBBATCH, B, H] reduction, plain jnp
    cls_results = []
    for layer in result:
        cls_output = layer[:, 0]                              # [sb*B, H]
        cls_results.append(cls_output.reshape(sbcount, BATCH, HIDDEN).mean(axis=0))

    return cls_results, query_results, doc_results


# TODO(synk): tokenizer / pretrained-checkpoint loading / save()/load()/freeze_bert()/
#             get_params() have no Pallas equivalent; forward() itself raises
#             NotImplementedError in the reference, so the compute path implemented
#             here is encode_bert().

if __name__ == "__main__":
    key = jax.random.PRNGKey(0)
    kp, kq, kd = jax.random.split(key, 3)
    params = init_params(kp)

    BATCH, QLEN, DLEN = 2, 8, 40
    query_tok = jax.random.randint(kq, (BATCH, QLEN), 3, VOCAB, dtype=jnp.int32)
    doc_tok = jax.random.randint(kd, (BATCH, DLEN), 3, VOCAB, dtype=jnp.int32)
    query_mask = jnp.ones((BATCH, QLEN), jnp.float32)
    doc_mask = jnp.ones((BATCH, DLEN), jnp.float32)

    encode = jax.jit(lambda qt, qm, dt, dm: encode_bert(params, qt, qm, dt, dm))
    cls_res, q_res, d_res = encode(query_tok, query_mask, doc_tok, doc_mask)
    jax.block_until_ready((cls_res, q_res, d_res))

    assert len(cls_res) == NLAYERS + 1 and cls_res[0].shape == (BATCH, HIDDEN)
    assert len(q_res) == NLAYERS + 1 and q_res[0].shape == (BATCH, QLEN, HIDDEN)
    assert len(d_res) == NLAYERS + 1 and d_res[0].shape == (BATCH, DLEN, HIDDEN)
    assert all(bool(jnp.isfinite(r).all()) for r in cls_res)
    print("KERNEL_OK")
</pallas_src>

<mosaic_0001>
module attributes {stable_mosaic.version = 11 : i64} {
  func.func @_emb_ln_kernel(%arg0: i32, %arg1: memref<1x31x32xf32, #tpu.memory_space<vmem>>, %arg2: memref<2x32xf32, #tpu.memory_space<vmem>>, %arg3: memref<1x31x32xf32, #tpu.memory_space<vmem>>) attributes {dimension_semantics = [#tpu.dimension_semantics<parallel>], iteration_bounds = array<i64: 4>, scalar_prefetch = 0 : i64, scratch_operands = 0 : i64, tpu.core_type = #tpu.core_type<tc>, window_params = [{transform_indices = @transform_0, window_bounds = array<i64: 1, 31, 32>}, {pipeline_mode = #tpu.pipeline_mode<synchronous>, transform_indices = @transform_1, window_bounds = array<i64: 2, 32>}, {transform_indices = @transform_2, window_bounds = array<i64: 1, 31, 32>}]} {
    %c0 = arith.constant 0 : index
    %c0_0 = arith.constant 0 : index
    %0 = vector.load %arg2[%c0, %c0_0] : memref<2x32xf32, #tpu.memory_space<vmem>>, vector<2x32xf32>
    %c0_1 = arith.constant 0 : index
    %c0_2 = arith.constant 0 : index
    %c0_3 = arith.constant 0 : index
    %1 = vector.load %arg1[%c0_1, %c0_2, %c0_3] : memref<1x31x32xf32, #tpu.memory_space<vmem>>, vector<1x31x32xf32>
    %2 = vector.shape_cast %1 : vector<1x31x32xf32> to vector<31x32xf32>
    %3 = vector.extract_strided_slice %0 {offsets = [0, 0], sizes = [1, 32], strides = [1, 1]} : vector<2x32xf32> to vector<1x32xf32>
    %4 = vector.extract_strided_slice %0 {offsets = [1, 0], sizes = [1, 32], strides = [1, 1]} : vector<2x32xf32> to vector<1x32xf32>
    %cst = arith.constant dense<0.000000e+00> : vector<31xf32>
    %5 = vector.multi_reduction <add>, %2, %cst [1] : vector<31x32xf32> to vector<31xf32>
    %6 = vector.shape_cast %5 : vector<31xf32> to vector<31x1xf32>
    %cst_4 = arith.constant 3.200000e+01 : f32
    %7 = vector.broadcast %cst_4 : f32 to vector<31x1xf32>
    %8 = arith.divf %6, %7 : vector<31x1xf32>
    %9 = vector.broadcast %8 : vector<31x1xf32> to vector<31x32xf32>
    %10 = arith.subf %2, %9 : vector<31x32xf32>
    %11 = arith.mulf %10, %10 : vector<31x32xf32>
    %cst_5 = arith.constant dense<0.000000e+00> : vector<31xf32>
    %12 = vector.multi_reduction <add>, %11, %cst_5 [1] : vector<31x32xf32> to vector<31xf32>
    %13 = vector.shape_cast %12 : vector<31xf32> to vector<31x1xf32>
    %cst_6 = arith.constant 3.200000e+01 : f32
    %14 = vector.broadcast %cst_6 : f32 to vector<31x1xf32>
    %15 = arith.divf %13, %14 : vector<31x1xf32>
    %cst_7 = arith.constant 9.99999996E-13 : f32
    %16 = vector.broadcast %cst_7 : f32 to vector<31x1xf32>
    %17 = arith.addf %15, %16 : vector<31x1xf32>
    %18 = math.rsqrt %17 : vector<31x1xf32>
    %19 = vector.broadcast %18 : vector<31x1xf32> to vector<31x32xf32>
    %20 = arith.mulf %10, %19 : vector<31x32xf32>
    %21 = vector.broadcast %3 : vector<1x32xf32> to vector<31x32xf32>
    %22 = arith.mulf %20, %21 : vector<31x32xf32>
    %23 = vector.broadcast %4 : vector<1x32xf32> to vector<31x32xf32>
    %24 = arith.addf %22, %23 : vector<31x32xf32>
    %c0_8 = arith.constant 0 : index
    %c0_9 = arith.constant 0 : index
    %c0_10 = arith.constant 0 : index
    %25 = vector.load %arg3[%c0_8, %c0_9, %c0_10] : memref<1x31x32xf32, #tpu.memory_space<vmem>>, vector<1x31x32xf32>
    %26 = vector.shape_cast %25 : vector<1x31x32xf32> to vector<31x32xf32>
    %27 = vector.shape_cast %24 : vector<31x32xf32> to vector<1x31x32xf32>
    tpu.vector_store %arg3[%c0_8, %c0_9, %c0_10], %27 {strides = array<i32>} : memref<1x31x32xf32, #tpu.memory_space<vmem>>, vector<1x31x32xf32>,
    return
  }
  func.func @transform_0(%arg0: i32) -> (i32, i32, i32) {
    %c0_i32 = arith.constant 0 : i32
    %c0_i32_0 = arith.constant 0 : i32
    %c0_i32_1 = arith.constant 0 : i32
    return %arg0, %c0_i32, %c0_i32_0 : i32, i32, i32
  }
  func.func @transform_1(%arg0: i32) -> (i32, i32) {
    %c0_i32 = arith.constant 0 : i32
    %c0_i32_0 = arith.constant 0 : i32
    %c0_i32_1 = arith.constant 0 : i32
    return %c0_i32, %c0_i32_0 : i32, i32
  }
  func.func @transform_2(%arg0: i32) -> (i32, i32, i32) {
    %c0_i32 = arith.constant 0 : i32
    %c0_i32_0 = arith.constant 0 : i32
    %c0_i32_1 = arith.constant 0 : i32
    return %arg0, %c0_i32, %c0_i32_0 : i32, i32, i32
  }
}

module attributes {stable_mosaic.version = 11 : i64} {
  func.func @_layer_kernel(%arg0: i32, %arg1: memref<1x31x32xf32, #tpu.memory_space<vmem>>, %arg2: memref<1x1x31xf32, #tpu.memory_space<vmem>>, %arg3: memref<32x96xf32, #tpu.memory_space<vmem>>, %arg4: memref<1x96xf32, #tpu.memory_space<vmem>>, %arg5: memref<32x32xf32, #tpu.memory_space<vmem>>, %arg6: memref<1x32xf32, #tpu.memory_space<vmem>>, %arg7: memref<2x32xf32, #tpu.memory_space<vmem>>, %arg8: memref<32x64xf32, #tpu.memory_space<vmem>>, %arg9: memref<1x64xf32, #tpu.memory_space<vmem>>, %arg10: memref<64x32xf32, #tpu.memory_space<vmem>>, %arg11: memref<1x32xf32, #tpu.memory_space<vmem>>, %arg12: memref<2x32xf32, #tpu.memory_space<vmem>>, %arg13: memref<1x31x32xf32, #tpu.memory_space<vmem>>) attributes {dimension_semantics = [#tpu.dimension_semantics<parallel>], iteration_bounds = array<i64: 4>, scalar_prefetch = 0 : i64, scratch_operands = 0 : i64, tpu.core_type = #tpu.core_type<tc>, window_params = [{transform_indices = @transform_0, window_bounds = array<i64: 1, 31, 32>}, {transform_indices = @transform_1, window_bounds = array<i64: 1, 1, 31>}, {pipeline_mode = #tpu.pipeline_mode<synchronous>, transform_indices = @transform_2, window_bounds = array<i64: 32, 96>}, {pipeline_mode = #tpu.pipeline_mode<synchronous>, transform_indices = @transform_3, window_bounds = array<i64: 1, 96>}, {pipeline_mode = #tpu.pipeline_mode<synchronous>, transform_indices = @transform_4, window_bounds = array<i64: 32, 32>}, {pipeline_mode = #tpu.pipeline_mode<synchronous>, transform_indices = @transform_5, window_bounds = array<i64: 1, 32>}, {pipeline_mode = #tpu.pipeline_mode<synchronous>, transform_indices = @transform_6, window_bounds = array<i64: 2, 32>}, {pipeline_mode = #tpu.pipeline_mode<synchronous>, transform_indices = @transform_7, window_bounds = array<i64: 32, 64>}, {pipeline_mode = #tpu.pipeline_mode<synchronous>, transform_indices = @transform_8, window_bounds = array<i64: 1, 64>}, {pipeline_mode = #tpu.pipeline_mode<synchronous>, transform_indices = @transform_9, window_bounds = array<i64: 64, 32>}, {pipeline_mode = #tpu.pipeline_mode<synchronous>, transform_indices = @transform_10, window_bounds = array<i64: 1, 32>}, {pipeline_mode = #tpu.pipeline_mode<synchronous>, transform_indices = @transform_11, window_bounds = array<i64: 2, 32>}, {transform_indices = @transform_12, window_bounds = array<i64: 1, 31, 32>}]} {
    %c0 = arith.constant 0 : index
    %c0_0 = arith.constant 0 : index
    %c0_1 = arith.constant 0 : index
    %0 = vector.load %arg1[%c0, %c0_0, %c0_1] : memref<1x31x32xf32, #tpu.memory_space<vmem>>, vector<1x31x32xf32>
    %1 = vector.shape_cast %0 : vector<1x31x32xf32> to vector<31x32xf32>
    %c0_2 = arith.constant 0 : index
    %c0_3 = arith.constant 0 : index
    %c0_4 = arith.constant 0 : index
    %2 = vector.load %arg2[%c0_2, %c0_3, %c0_4] : memref<1x1x31xf32, #tpu.memory_space<vmem>>, vector<1x1x31xf32>
    %3 = vector.shape_cast %2 : vector<1x1x31xf32> to vector<1x31xf32>
    %c0_5 = arith.constant 0 : index
    %c0_6 = arith.constant 0 : index
    %4 = vector.load %arg3[%c0_5, %c0_6] : memref<32x96xf32, #tpu.memory_space<vmem>>, vector<32x96xf32>
    %5 = arith.truncf %1 : vector<31x32xf32> to vector<31x32xbf16>
    %6 = arith.truncf %4 : vector<32x96xf32> to vector<32x96xbf16>
    %cst = arith.constant dense<0.000000e+00> : vector<31x96xf32>
    %7 = tpu.matmul %5, %6, %cst {dimension_numbers = #tpu.dot_dimension_numbers<[1], [0], [0], [1], [0, 0, 1, 1], [], []>} : vector<31x32xbf16>, vector<32x96xbf16>, vector<31x96xf32> -> vector<31x96xf32>
    %c0_7 = arith.constant 0 : index
    %c0_8 = arith.constant 0 : index
    %8 = vector.load %arg4[%c0_7, %c0_8] : memref<1x96xf32, #tpu.memory_space<vmem>>, vector<1x96xf32>
    %9 = vector.broadcast %8 : vector<1x96xf32> to vector<31x96xf32>
    %10 = arith.addf %7, %9 : vector<31x96xf32>
    %cst_9 = arith.constant 0.000000e+00 : f32
    %11 = vector.broadcast %cst_9 : f32 to vector<31x32xf32>
    %12 = vector.extract_strided_slice %10 {offsets = [0, 0], sizes = [31, 16], strides = [1, 1]} : vector<31x96xf32> to vector<31x16xf32>
    %13 = vector.extract_strided_slice %10 {offsets = [0, 32], sizes = [31, 16], strides = [1, 1]} : vector<31x96xf32> to vector<31x16xf32>
    %14 = vector.extract_strided_slice %10 {offsets = [0, 64], sizes = [31, 16], strides = [1, 1]} : vector<31x96xf32> to vector<31x16xf32>
    %15 = arith.truncf %12 : vector<31x16xf32> to vector<31x16xbf16>
    %16 = arith.truncf %13 : vector<31x16xf32> to vector<31x16xbf16>
    %cst_10 = arith.constant dense<0.000000e+00> : vector<31x31xf32>
    %17 = tpu.matmul %15, %16, %cst_10 {dimension_numbers = #tpu.dot_dimension_numbers<[1], [1], [0], [0], [0, 0, 1, 0], [], []>} : vector<31x16xbf16>, vector<31x16xbf16>, vector<31x31xf32> -> vector<31x31xf32>
    %cst_11 = arith.constant 2.500000e-01 : f32
    %18 = vector.broadcast %cst_11 : f32 to vector<31x31xf32>
    %19 = arith.mulf %17, %18 : vector<31x31xf32>
    %20 = vector.broadcast %3 : vector<1x31xf32> to vector<31x31xf32>
    %21 = arith.addf %19, %20 : vector<31x31xf32>
    %cst_12 = arith.constant dense<0xFF800000> : vector<31xf32>
    %22 = vector.multi_reduction <maximumf>, %21, %cst_12 [1] : vector<31x31xf32> to vector<31xf32>
    %23 = vector.shape_cast %22 : vector<31xf32> to vector<31x1xf32>
    %24 = vector.broadcast %23 : vector<31x1xf32> to vector<31x31xf32>
    %25 = arith.subf %21, %24 : vector<31x31xf32>
    %26 = math.exp %25 : vector<31x31xf32>
    %cst_13 = arith.constant dense<0.000000e+00> : vector<31xf32>
    %27 = vector.multi_reduction <add>, %26, %cst_13 [1] : vector<31x31xf32> to vector<31xf32>
    %28 = vector.shape_cast %27 : vector<31xf32> to vector<31x1xf32>
    %29 = tpu.reciprocal %28 {approx = true} : vector<31x1xf32> -> vector<31x1xf32>
    %30 = vector.broadcast %29 : vector<31x1xf32> to vector<31x31xf32>
    %31 = arith.mulf %26, %30 : vector<31x31xf32>
    %32 = arith.truncf %31 : vector<31x31xf32> to vector<31x31xbf16>
    %33 = arith.truncf %14 : vector<31x16xf32> to vector<31x16xbf16>
    %cst_14 = arith.constant dense<0.000000e+00> : vector<31x16xf32>
    %34 = tpu.matmul %32, %33, %cst_14 {dimension_numbers = #tpu.dot_dimension_numbers<[1], [0], [0], [1], [0, 0, 1, 1], [], []>} : vector<31x31xbf16>, vector<31x16xbf16>, vector<31x16xf32> -> vector<31x16xf32>
    %c0_15 = arith.constant 0 : index
    %c0_16 = arith.constant 0 : index
    %35 = vector.load %arg5[%c0_15, %c0_16] : memref<32x32xf32, #tpu.memory_space<vmem>>, vector<16x32xf32>
    %36 = arith.truncf %34 : vector<31x16xf32> to vector<31x16xbf16>
    %37 = arith.truncf %35 : vector<16x32xf32> to vector<16x32xbf16>
    %cst_17 = arith.constant dense<0.000000e+00> : vector<31x32xf32>
    %38 = tpu.matmul %36, %37, %cst_17 {dimension_numbers = #tpu.dot_dimension_numbers<[1], [0], [0], [1], [0, 0, 1, 1], [], []>} : vector<31x16xbf16>, vector<16x32xbf16>, vector<31x32xf32> -> vector<31x32xf32>
    %39 = arith.addf %11, %38 : vector<31x32xf32>
    %40 = vector.extract_strided_slice %10 {offsets = [0, 16], sizes = [31, 16], strides = [1, 1]} : vector<31x96xf32> to vector<31x16xf32>
    %41 = vector.extract_strided_slice %10 {offsets = [0, 48], sizes = [31, 16], strides = [1, 1]} : vector<31x96xf32> to vector<31x16xf32>
    %42 = vector.extract_strided_slice %10 {offsets = [0, 80], sizes = [31, 16], strides = [1, 1]} : vector<31x96xf32> to vector<31x16xf32>
    %43 = arith.truncf %40 : vector<31x16xf32> to vector<31x16xbf16>
    %44 = arith.truncf %41 : vector<31x16xf32> to vector<31x16xbf16>
    %cst_18 = arith.constant dense<0.000000e+00> : vector<31x31xf32>
    %45 = tpu.matmul %43, %44, %cst_18 {dimension_numbers = #tpu.dot_dimension_numbers<[1], [1], [0], [0], [0, 0, 1, 0], [], []>} : vector<31x16xbf16>, vector<31x16xbf16>, vector<31x31xf32> -> vector<31x31xf32>
    %cst_19 = arith.constant 2.500000e-01 : f32
    %46 = vector.broadcast %cst_19 : f32 to vector<31x31xf32>
    %47 = arith.mulf %45, %46 : vector<31x31xf32>
    %48 = vector.broadcast %3 : vector<1x31xf32> to vector<31x31xf32>
    %49 = arith.addf %47, %48 : vector<31x31xf32>
    %cst_20 = arith.constant dense<0xFF800000> : vector<31xf32>
    %50 = vector.multi_reduction <maximumf>, %49, %cst_20 [1] : vector<31x31xf32> to vector<31xf32>
    %51 = vector.shape_cast %50 : vector<31xf32> to vector<31x1xf32>
    %52 = vector.broadcast %51 : vector<31x1xf32> to vector<31x31xf32>
    %53 = arith.subf %49, %52 : vector<31x31xf32>
    %54 = math.exp %53 : vector<31x31xf32>
    %cst_21 = arith.constant dense<0.000000e+00> : vector<31xf32>
    %55 = vector.multi_reduction <add>, %54, %cst_21 [1] : vector<31x31xf32> to vector<31xf32>
    %56 = vector.shape_cast %55 : vector<31xf32> to vector<31x1xf32>
    %57 = tpu.reciprocal %56 {approx = true} : vector<31x1xf32> -> vector<31x1xf32>
    %58 = vector.broadcast %57 : vector<31x1xf32> to vector<31x31xf32>
    %59 = arith.mulf %54, %58 : vector<31x31xf32>
    %60 = arith.truncf %59 : vector<31x31xf32> to vector<31x31xbf16>
    %61 = arith.truncf %42 : vector<31x16xf32> to vector<31x16xbf16>
    %cst_22 = arith.constant dense<0.000000e+00> : vector<31x16xf32>
    %62 = tpu.matmul %60, %61, %cst_22 {dimension_numbers = #tpu.dot_dimension_numbers<[1], [0], [0], [1], [0, 0, 1, 1], [], []>} : vector<31x31xbf16>, vector<31x16xbf16>, vector<31x16xf32> -> vector<31x16xf32>
    %c16 = arith.constant 16 : index
    %c0_23 = arith.constant 0 : index
    %63 = vector.load %arg5[%c16, %c0_23] : memref<32x32xf32, #tpu.memory_space<vmem>>, vector<16x32xf32>
    %64 = arith.truncf %62 : vector<31x16xf32> to vector<31x16xbf16>
    %65 = arith.truncf %63 : vector<16x32xf32> to vector<16x32xbf16>
    %cst_24 = arith.constant dense<0.000000e+00> : vector<31x32xf32>
    %66 = tpu.matmul %64, %65, %cst_24 {dimension_numbers = #tpu.dot_dimension_numbers<[1], [0], [0], [1], [0, 0, 1, 1], [], []>} : vector<31x16xbf16>, vector<16x32xbf16>, vector<31x32xf32> -> vector<31x32xf32>
    %67 = arith.addf %39, %66 : vector<31x32xf32>
    %c0_25 = arith.constant 0 : index
    %c0_26 = arith.constant 0 : index
    %68 = vector.load %arg6[%c0_25, %c0_26] : memref<1x32xf32, #tpu.memory_space<vmem>>, vector<1x32xf32>
    %69 = vector.broadcast %68 : vector<1x32xf32> to vector<31x32xf32>
    %70 = arith.addf %67, %69 : vector<31x32xf32>
    %c0_27 = arith.constant 0 : index
    %c0_28 = arith.constant 0 : index
    %71 = vector.load %arg7[%c0_27, %c0_28] : memref<2x32xf32, #tpu.memory_space<vmem>>, vector<2x32xf32>
    %72 = arith.addf %1, %70 : vector<31x32xf32>
    %73 = vector.extract_strided_slice %71 {offsets = [0, 0], sizes = [1, 32], strides = [1, 1]} : vector<2x32xf32> to vector<1x32xf32>
    %74 = vector.extract_strided_slice %71 {offsets = [1, 0], sizes = [1, 32], strides = [1, 1]} : vector<2x32xf32> to vector<1x32xf32>
    %cst_29 = arith.constant dense<0.000000e+00> : vector<31xf32>
    %75 = vector.multi_reduction <add>, %72, %cst_29 [1] : vector<31x32xf32> to vector<31xf32>
    %76 = vector.shape_cast %75 : vector<31xf32> to vector<31x1xf32>
    %cst_30 = arith.constant 3.200000e+01 : f32
    %77 = vector.broadcast %cst_30 : f32 to vector<31x1xf32>
    %78 = arith.divf %76, %77 : vector<31x1xf32>
    %79 = vector.broadcast %78 : vector<31x1xf32> to vector<31x32xf32>
    %80 = arith.subf %72, %79 : vector<31x32xf32>
    %81 = arith.mulf %80, %80 : vector<31x32xf32>
    %cst_31 = arith.constant dense<0.000000e+00> : vector<31xf32>
    %82 = vector.multi_reduction <add>, %81, %cst_31 [1] : vector<31x32xf32> to vector<31xf32>
    %83 = vector.shape_cast %82 : vector<31xf32> to vector<31x1xf32>
    %cst_32 = arith.constant 3.200000e+01 : f32
    %84 = vector.broadcast %cst_32 : f32 to vector<31x1xf32>
    %85 = arith.divf %83, %84 : vector<31x1xf32>
    %cst_33 = arith.constant 9.99999996E-13 : f32
    %86 = vector.broadcast %cst_33 : f32 to vector<31x1xf32>
    %87 = arith.addf %85, %86 : vector<31x1xf32>
    %88 = math.rsqrt %87 : vector<31x1xf32>
    %89 = vector.broadcast %88 : vector<31x1xf32> to vector<31x32xf32>
    %90 = arith.mulf %80, %89 : vector<31x32xf32>
    %91 = vector.broadcast %73 : vector<1x32xf32> to vector<31x32xf32>
    %92 = arith.mulf %90, %91 : vector<31x32xf32>
    %93 = vector.broadcast %74 : vector<1x32xf32> to vector<31x32xf32>
    %94 = arith.addf %92, %93 : vector<31x32xf32>
    %c0_34 = arith.constant 0 : index
    %c0_35 = arith.constant 0 : index
    %95 = vector.load %arg8[%c0_34, %c0_35] : memref<32x64xf32, #tpu.memory_space<vmem>>, vector<32x64xf32>
    %96 = arith.truncf %94 : vector<31x32xf32> to vector<31x32xbf16>
    %97 = arith.truncf %95 : vector<32x64xf32> to vector<32x64xbf16>
    %cst_36 = arith.constant dense<0.000000e+00> : vector<31x64xf32>
    %98 = tpu.matmul %96, %97, %cst_36 {dimension_numbers = #tpu.dot_dimension_numbers<[1], [0], [0], [1], [0, 0, 1, 1], [], []>} : vector<31x32xbf16>, vector<32x64xbf16>, vector<31x64xf32> -> vector<31x64xf32>
    %c0_37 = arith.constant 0 : index
    %c0_38 = arith.constant 0 : index
    %99 = vector.load %arg9[%c0_37, %c0_38] : memref<1x64xf32, #tpu.memory_space<vmem>>, vector<1x64xf32>
    %100 = vector.broadcast %99 : vector<1x64xf32> to vector<31x64xf32>
    %101 = arith.addf %98, %100 : vector<31x64xf32>
    %cst_39 = arith.constant 5.000000e-01 : f32
    %102 = vector.broadcast %cst_39 : f32 to vector<31x64xf32>
    %103 = arith.mulf %102, %101 : vector<31x64xf32>
    %cst_40 = arith.constant 4.471500e-02 : f32
    %104 = vector.broadcast %cst_40 : f32 to vector<31x64xf32>
    %105 = arith.mulf %104, %101 : vector<31x64xf32>
    %106 = arith.mulf %105, %101 : vector<31x64xf32>
    %107 = arith.mulf %106, %101 : vector<31x64xf32>
    %108 = arith.addf %101, %107 : vector<31x64xf32>
    %cst_41 = arith.constant 0.797884583 : f32
    %109 = vector.broadcast %cst_41 : f32 to vector<31x64xf32>
    %110 = arith.mulf %109, %108 : vector<31x64xf32>
    %111 = math.tanh %110 : vector<31x64xf32>
    %cst_42 = arith.constant 1.000000e+00 : f32
    %112 = vector.broadcast %cst_42 : f32 to vector<31x64xf32>
    %113 = arith.addf %112, %111 : vector<31x64xf32>
    %114 = arith.mulf %103, %113 : vector<31x64xf32>
    %c0_43 = arith.constant 0 : index
    %c0_44 = arith.constant 0 : index
    %115 = vector.load %arg10[%c0_43, %c0_44] : memref<64x32xf32, #tpu.memory_space<vmem>>, vector<64x32xf32>
    %116 = arith.truncf %114 : vector<31x64xf32> to vector<31x64xbf16>
    %117 = arith.truncf %115 : vector<64x32xf32> to vector<64x32xbf16>
    %cst_45 = arith.constant dense<0.000000e+00> : vector<31x32xf32>
    %118 = tpu.matmul %116, %117, %cst_45 {dimension_numbers = #tpu.dot_dimension_numbers<[1], [0], [0], [1], [0, 0, 1, 1], [], []>} : vector<31x64xbf16>, vector<64x32xbf16>, vector<31x32xf32> -> vector<31x32xf32>
    %c0_46 = arith.constant 0 : index
    %c0_47 = arith.constant 0 : index
    %119 = vector.load %arg11[%c0_46, %c0_47] : memref<1x32xf32, #tpu.memory_space<vmem>>, vector<1x32xf32>
    %120 = vector.broadcast %119 : vector<1x32xf32> to vector<31x32xf32>
    %121 = arith.addf %118, %120 : vector<31x32xf32>
    %c0_48 = arith.constant 0 : index
    %c0_49 = arith.constant 0 : index
    %122 = vector.load %arg12[%c0_48, %c0_49] : memref<2x32xf32, #tpu.memory_space<vmem>>, vector<2x32xf32>
    %123 = arith.addf %94, %121 : vector<31x32xf32>
    %124 = vector.extract_strided_slice %122 {offsets = [0, 0], sizes = [1, 32], strides = [1, 1]} : vector<2x32xf32> to vector<1x32xf32>
    %125 = vector.extract_strided_slice %122 {offsets = [1, 0], sizes = [1, 32], strides = [1, 1]} : vector<2x32xf32> to vector<1x32xf32>
    %cst_50 = arith.constant dense<0.000000e+00> : vector<31xf32>
    %126 = vector.multi_reduction <add>, %123, %cst_50 [1] : vector<31x32xf32> to vector<31xf32>
    %127 = vector.shape_cast %126 : vector<31xf32> to vector<31x1xf32>
    %cst_51 = arith.constant 3.200000e+01 : f32
    %128 = vector.broadcast %cst_51 : f32 to vector<31x1xf32>
    %129 = arith.divf %127, %128 : vector<31x1xf32>
    %130 = vector.broadcast %129 : vector<31x1xf32> to vector<31x32xf32>
    %131 = arith.subf %123, %130 : vector<31x32xf32>
    %132 = arith.mulf %131, %131 : vector<31x32xf32>
    %cst_52 = arith.constant dense<0.000000e+00> : vector<31xf32>
    %133 = vector.multi_reduction <add>, %132, %cst_52 [1] : vector<31x32xf32> to vector<31xf32>
    %134 = vector.shape_cast %133 : vector<31xf32> to vector<31x1xf32>
    %cst_53 = arith.constant 3.200000e+01 : f32
    %135 = vector.broadcast %cst_53 : f32 to vector<31x1xf32>
    %136 = arith.divf %134, %135 : vector<31x1xf32>
    %cst_54 = arith.constant 9.99999996E-13 : f32
    %137 = vector.broadcast %cst_54 : f32 to vector<31x1xf32>
    %138 = arith.addf %136, %137 : vector<31x1xf32>
    %139 = math.rsqrt %138 : vector<31x1xf32>
    %140 = vector.broadcast %139 : vector<31x1xf32> to vector<31x32xf32>
    %141 = arith.mulf %131, %140 : vector<31x32xf32>
    %142 = vector.broadcast %124 : vector<1x32xf32> to vector<31x32xf32>
    %143 = arith.mulf %141, %142 : vector<31x32xf32>
    %144 = vector.broadcast %125 : vector<1x32xf32> to vector<31x32xf32>
    %145 = arith.addf %143, %144 : vector<31x32xf32>
    %c0_55 = arith.constant 0 : index
    %c0_56 = arith.constant 0 : index
    %c0_57 = arith.constant 0 : index
    %146 = vector.load %arg13[%c0_55, %c0_56, %c0_57] : memref<1x31x32xf32, #tpu.memory_space<vmem>>, vector<1x31x32xf32>
    %147 = vector.shape_cast %146 : vector<1x31x32xf32> to vector<31x32xf32>
    %148 = vector.shape_cast %145 : vector<31x32xf32> to vector<1x31x32xf32>
    tpu.vector_store %arg13[%c0_55, %c0_56, %c0_57], %148 {strides = array<i32>} : memref<1x31x32xf32, #tpu.memory_space<vmem>>, vector<1x31x32xf32>,
    return
  }
  func.func @transform_0(%arg0: i32) -> (i32, i32, i32) {
    %c0_i32 = arith.constant 0 : i32
    %c0_i32_0 = arith.constant 0 : i32
    %c0_i32_1 = arith.constant 0 : i32
    return %arg0, %c0_i32, %c0_i32_0 : i32, i32, i32
  }
  func.func @transform_1(%arg0: i32) -> (i32, i32, i32) {
    %c0_i32 = arith.constant 0 : i32
    %c0_i32_0 = arith.constant 0 : i32
    %c0_i32_1 = arith.constant 0 : i32
    return %arg0, %c0_i32, %c0_i32_0 : i32, i32, i32
  }
  func.func @transform_2(%arg0: i32) -> (i32, i32) {
    %c0_i32 = arith.constant 0 : i32
    %c0_i32_0 = arith.constant 0 : i32
    %c0_i32_1 = arith.constant 0 : i32
    return %c0_i32, %c0_i32_0 : i32, i32
  }
  func.func @transform_3(%arg0: i32) -> (i32, i32) {
    %c0_i32 = arith.constant 0 : i32
    %c0_i32_0 = arith.constant 0 : i32
    %c0_i32_1 = arith.constant 0 : i32
    return %c0_i32, %c0_i32_0 : i32, i32
  }
  func.func @transform_4(%arg0: i32) -> (i32, i32) {
    %c0_i32 = arith.constant 0 : i32
    %c0_i32_0 = arith.constant 0 : i32
    %c0_i32_1 = arith.constant 0 : i32
    return %c0_i32, %c0_i32_0 : i32, i32
  }
  func.func @transform_5(%arg0: i32) -> (i32, i32) {
    %c0_i32 = arith.constant 0 : i32
    %c0_i32_0 = arith.constant 0 : i32
    %c0_i32_1 = arith.constant 0 : i32
    return %c0_i32, %c0_i32_0 : i32, i32
  }
  func.func @transform_6(%arg0: i32) -> (i32, i32) {
    %c0_i32 = arith.constant 0 : i32
    %c0_i32_0 = arith.constant 0 : i32
    %c0_i32_1 = arith.constant 0 : i32
    return %c0_i32, %c0_i32_0 : i32, i32
  }
  func.func @transform_7(%arg0: i32) -> (i32, i32) {
    %c0_i32 = arith.constant 0 : i32
    %c0_i32_0 = arith.constant 0 : i32
    %c0_i32_1 = arith.constant 0 : i32
    return %c0_i32, %c0_i32_0 : i32, i32
  }
  func.func @transform_8(%arg0: i32) -> (i32, i32) {
    %c0_i32 = arith.constant 0 : i32
    %c0_i32_0 = arith.constant 0 : i32
    %c0_i32_1 = arith.constant 0 : i32
    return %c0_i32, %c0_i32_0 : i32, i32
  }
  func.func @transform_9(%arg0: i32) -> (i32, i32) {
    %c0_i32 = arith.constant 0 : i32
    %c0_i32_0 = arith.constant 0 : i32
    %c0_i32_1 = arith.constant 0 : i32
    return %c0_i32, %c0_i32_0 : i32, i32
  }
  func.func @transform_10(%arg0: i32) -> (i32, i32) {
    %c0_i32 = arith.constant 0 : i32
    %c0_i32_0 = arith.constant 0 : i32
    %c0_i32_1 = arith.constant 0 : i32
    return %c0_i32, %c0_i32_0 : i32, i32
  }
  func.func @transform_11(%arg0: i32) -> (i32, i32) {
    %c0_i32 = arith.constant 0 : i32
    %c0_i32_0 = arith.constant 0 : i32
    %c0_i32_1 = arith.constant 0 : i32
    return %c0_i32, %c0_i32_0 : i32, i32
  }
  func.func @transform_12(%arg0: i32) -> (i32, i32, i32) {
    %c0_i32 = arith.constant 0 : i32
    %c0_i32_0 = arith.constant 0 : i32
    %c0_i32_1 = arith.constant 0 : i32
    return %arg0, %c0_i32, %c0_i32_0 : i32, i32, i32
  }
}

</mosaic_0001>

<llo_original>
// kernel: _lambda_.3
$region0: #{_lambda_.3}
  #allocation0 [shape = 'u32[]', space=smem, size = 0x4, offset = 0x4, fixed_abs, tag = 'smem constant byte address 0x4 - core index']
  #allocation1 [shape = 'u32[144,128]{1,0:T(1,128)}', space=vmem, size = 0x12000, scoped, tag = 'internal scratch']
  %s0 = inlined_call_operand.vmem [shape: f32[4,31,32], index: 0, kind: input, shape index: {}]
  %s1 = inlined_call_operand.vmem [shape: f32[2,32], index: 1, kind: input, shape index: {}]
  %s2 = inlined_call_operand.vmem [shape: f32[4,31,32], index: 2, kind: output, shape index: {}]
  %s3 = sld [smem:[#allocation0]]
  $region41: #{_lambda_.3} parent=0
    _
  %s5 = ssub.s32 1, %s3
  %s6 = scalar_select 0, %s5, %s3
  loop: start=0, step=1, limit=6
  $region2: #{_lambda_.3} parent=0 // loop_pre_header
    _
  $region3: #{_lambda_.3} parent=0 // loop_header
    %s8 = sphi 0, %s12
    %p9 = scmp.ge.s32.totalorder %s8, 6
    %s18 = sphi 0, %s20
    %s21 = sphi 0, %s18
    %s22 = sphi 0, %s21
    %s38 = sphi 0, %s22
    %s42 = sphi 0, %s42
    %s44 = sphi 0, %s42
    %s45 = sphi 0, %s44
    %s59 = sphi 0, %s45
    %s65 = sphi 0, %s67
    %s68 = sphi 0, %s65
    %s69 = sphi 0, %s68
    %s85 = sphi 0, %s69
  $region4: #{_lambda_.3} parent=0 // loop_header_branch
    %11 = sbr.rel (%p9) target = $region8
  $region5: #{_lambda_.3} parent=0 // loop_body
    %s13 = ssub.s32 %s8, 1
    %s14 = ssub.s32 %s8, 2
    %s15 = sadd.s32 %s8, 1
    %s16 = ssub.s32 %s8, %s15
    %p17 = scmp.eq.s32.totalorder %s16, 0
    %s19 = sadd.s32 %s18, 1
    %s20 = scalar_select %p17, %s18, %s19
    %p23 = pneg %p17
    %p24 = scmp.eq.s32.totalorder %s8, 3
    %p25 = por %p23, %p24
    %p26 = scmp.ne.s32.totalorder %s18, %s21
    %p27 = scmp.eq.s32.totalorder %s8, 0
    %p28 = por %p26, %p27
    %p29 = scmp.ne.s32.totalorder %s18, %s21
    %p30 = scmp.eq.s32.totalorder %s13, 3
    %p31 = por %p29, %p30
    %p32 = scmp.ne.s32.totalorder %s21, %s22
    %p33 = scmp.eq.s32.totalorder %s13, 0
    %p34 = por %p32, %p33
    %p35 = scmp.ne.s32.totalorder %s21, %s22
    %p36 = scmp.eq.s32.totalorder %s14, 3
    %p37 = por %p35, %p36
    %p39 = scmp.ne.s32.totalorder %s22, %s38
    %p40 = scmp.eq.s32.totalorder %s14, 0
    %p41 = por %p39, %p40
    %s43 = sadd.s32 %s42, 1
    %p46 = scmp.eq.s32.totalorder %s8, 3
    %p47 = scmp.ne.s32.totalorder %s42, %s44
    %p48 = scmp.eq.s32.totalorder %s8, 0
    %p49 = por %p47, %p48
    %p50 = scmp.ne.s32.totalorder %s42, %s44
    %p51 = scmp.eq.s32.totalorder %s13, 3
    %p52 = por %p50, %p51
    %p53 = scmp.ne.s32.totalorder %s44, %s45
    %p54 = scmp.eq.s32.totalorder %s13, 0
    %p55 = por %p53, %p54
    %p56 = scmp.ne.s32.totalorder %s44, %s45
    %p57 = scmp.eq.s32.totalorder %s14, 3
    %p58 = por %p56, %p57
    %p60 = scmp.ne.s32.totalorder %s45, %s59
    %p61 = scmp.eq.s32.totalorder %s14, 0
    %p62 = por %p60, %p61
    %s63 = ssub.s32 %s8, %s15
    %p64 = scmp.eq.s32.totalorder %s63, 0
    %s66 = sadd.s32 %s65, 1
    %s67 = scalar_select %p64, %s65, %s66
    %p70 = pneg %p64
    %p71 = scmp.eq.s32.totalorder %s8, 3
    %p72 = por %p70, %p71
    %p73 = scmp.ne.s32.totalorder %s65, %s68
    %p74 = scmp.eq.s32.totalorder %s8, 0
    %p75 = por %p73, %p74
    %p76 = scmp.ne.s32.totalorder %s65, %s68
    %p77 = scmp.eq.s32.totalorder %s13, 3
    %p78 = por %p76, %p77
    %p79 = scmp.ne.s32.totalorder %s68, %s69
    %p80 = scmp.eq.s32.totalorder %s13, 0
    %p81 = por %p79, %p80
    %p82 = scmp.ne.s32.totalorder %s68, %s69
    %p83 = scmp.eq.s32.totalorder %s14, 3
    %p84 = por %p82, %p83
    %p86 = scmp.ne.s32.totalorder %s69, %s85
    %p87 = scmp.eq.s32.totalorder %s14, 0
    %p88 = por %p86, %p87
    %p89 = scmp.le.s32.totalorder 1, %s8
    %p90 = scmp.lt.s32.totalorder %s8, 5
    %p91 = pnand %p89, %p90
    %p92 = pneg %p91
    // Predicated region
    $region9: #{_lambda_.3} parent=5 // pred_check
      _
    $region10: #{_lambda_.3} parent=5 // pred_check_branch
      %94 = sbr.rel (%p91) target = $region12
    $region11: #{_lambda_.3} parent=5 // pred_region
      %s95 = ssub.s32 %s8, 1
      // Predicated region
      $region13: #{_lambda_.3} parent=11 // pred_check
        %p96 = pneg %p55
      $region14: #{_lambda_.3} parent=11 // pred_check_branch
        %98 = sbr.rel (%p96) target = $region16
      $region15: #{_lambda_.3} parent=11 // pred_region
        _
      $region16: #{_lambda_.3} parent=11 // pred_fallthru
        _
    $region12: #{_lambda_.3} parent=5 // pred_fallthru
      _
    %p99 = scmp.lt.s32.totalorder %s8, 4
    // Predicated region
    $region17: #{_lambda_.3} parent=5 // pred_check
      %p100 = pneg %p99
    $region18: #{_lambda_.3} parent=5 // pred_check_branch
      %102 = sbr.rel (%p100) target = $region20
    $region19: #{_lambda_.3} parent=5 // pred_region
      // Predicated region
      $region21: #{_lambda_.3} parent=19 // pred_check
        %p103 = pneg %p28
      $region22: #{_lambda_.3} parent=19 // pred_check_branch
        %105 = sbr.rel (%p103) target = $region24
      $region23: #{_lambda_.3} parent=19 // pred_region
        %p106 = scmp.lt.s32.totalorder %s8, 3
        %s107 = scalar_select %p106, %s8, 3
        %s108 = smul.addr %s107, 4
        %s109 = smul.addr %s108, 8
        %s110 = scalar_lea.vmem %s0, %s109
      $region24: #{_lambda_.3} parent=19 // pred_fallthru
        _
    $region20: #{_lambda_.3} parent=5 // pred_fallthru
      _
    %p111 = scmp.le.s32.totalorder 1, %s8
    %p112 = scmp.lt.s32.totalorder %s8, 5
    %p113 = pnand %p111, %p112
    %p114 = pneg %p113
    // Predicated region
    $region25: #{_lambda_.3} parent=5 // pred_check
      _
    $region26: #{_lambda_.3} parent=5 // pred_check_branch
      %116 = sbr.rel (%p113) target = $region28
    $region27: #{_lambda_.3} parent=5 // pred_region
      %s117 = ssub.s32 %s8, 1
      %p118 = scmp.lt.s32.totalorder %s13, 3
      %s119 = scalar_select %p118, %s13, 3
      %s120 = smul.addr %s119, 4
      %s121 = smul.addr %s120, 8
      %s122 = scalar_lea.vmem %s0, %s121
      %p123 = pneg %p34
      %p124 = pneg %p31
      %p125 = pneg %p55
      %p126 = pneg %p52
      %p127 = pneg %p81
      %p128 = pneg %p78
      %p129 = scmp.lt.s32.totalorder %s13, 3
      %s130 = scalar_select %p129, %s13, 3
      %s131 = smul.addr %s130, 4
      %s132 = smul.addr %s131, 8
      %s133 = scalar_lea.vmem %s2, %s132
      %p134 = scmp.lt.s32.totalorder %s13, 3
      %s135 = scalar_select %p134, %s13, 3
      %s136 = smul.addr %s135, 4
      %s137 = smul.addr %s136, 8
      %s138 = scalar_lea.vmem %s0, %s137
      %p139 = scmp.lt.s32.totalorder %s13, 3
      %s140 = scalar_select %p139, %s13, 3
      %s141 = smul.addr %s140, 4
      %s142 = smul.addr %s141, 8
      %s143 = scalar_lea.vmem %s2, %s142
      %v144 = vld [vmem:[%s1] sm:$0x3]
      %v145 = vld [vmem:[%s138] sm:$0xff]
      %v146 = vld [vmem:[%s138 + $0x8] sm:$0xff]
      %v147 = vld [vmem:[%s138 + $0x10] sm:$0xff]
      %v148 = vld [vmem:[%s138 + $0x18] sm:$0x7f]
      %vm149 = vcmask 261120
      %v150 = vsel %vm149, %v145, 0.0
      %151 = vadd.xlane.f32.xlu0 %v150
      %v152 = vpop.xlane.xlu0 %151
      %v153 = vsel %vm149, %v146, 0.0
      %154 = vadd.xlane.f32.xlu0 %v153
      %v155 = vpop.xlane.xlu0 %154
      %v156 = vsel %vm149, %v147, 0.0
      %157 = vadd.xlane.f32.xlu0 %v156
      %v158 = vpop.xlane.xlu0 %157
      %vm159 = vcmask 260096
      %v160 = vsel %vm159, %v148, 0.0
      %161 = vadd.xlane.f32.xlu0 %v160
      %v162 = vpop.xlane.xlu0 %161
      %v163 = vrcp.pop 32.0
      %v164 = vmul.f32 %v152, %v163
      %v165 = vmul.f32 %v155, %v163
      %v166 = vmul.f32 %v158, %v163
      %v167 = vmul.f32 %v162, %v163
      %v168 = vsub.f32 %v145, %v164
      %v169 = vsub.f32 %v146, %v165
      %v170 = vsub.f32 %v147, %v166
      %v171 = vsub.f32 %v148, %v167
      %v172 = vmul.f32 %v168, %v168
      %v173 = vmul.f32 %v169, %v169
      %v174 = vmul.f32 %v170, %v170
      %v175 = vmul.f32 %v171, %v171
      %v176 = vsel %vm149, %v172, 0.0
      %177 = vadd.xlane.f32.xlu0 %v176
      %v178 = vpop.xlane.xlu0 %177
      %v179 = vsel %vm149, %v173, 0.0
      %180 = vadd.xlane.f32.xlu0 %v179
      %v181 = vpop.xlane.xlu0 %180
      %v182 = vsel %vm149, %v174, 0.0
      %183 = vadd.xlane.f32.xlu0 %v182
      %v184 = vpop.xlane.xlu0 %183
      %v185 = vsel %vm159, %v175, 0.0
      %186 = vadd.xlane.f32.xlu0 %v185
      %v187 = vpop.xlane.xlu0 %186
      %v188 = vmul.f32 %v178, %v163
      %v189 = vmul.f32 %v181, %v163
      %v190 = vmul.f32 %v184, %v163
      %v191 = vmul.f32 %v187, %v163
      %v192 = vadd.f32 %v188, 1e-12
      %v193 = vadd.f32 %v189, 1e-12
      %v194 = vadd.f32 %v190, 1e-12
      %v195 = vadd.f32 %v191, 1e-12
      %v196 = vrsqrt.pop %v192
      %v197 = vrsqrt.pop %v193
      %v198 = vrsqrt.pop %v194
      %v199 = vrsqrt.pop %v195
      %v200 = vmul.f32 %v168, %v196
      %v201 = vmul.f32 %v169, %v197
      %v202 = vmul.f32 %v170, %v198
      %v203 = vmul.f32 %v171, %v199
      %v204 = vlaneseq
      %v205 = vshrl.u32 %v204, 7
      %v206 = vsub.s32 0, %v205
      %v207 = vrot.slane %v144, %v206
      %v208 = vmul.f32 %v200, %v207
      %v209 = vmul.f32 %v201, %v207
      %v210 = vmul.f32 %v202, %v207
      %v211 = vmul.f32 %v203, %v207
      %v212 = vlaneseq
      %v213 = vshrl.u32 %v212, 7
      %v214 = vsub.s32 1, %v213
      %v215 = vrot.slane %v144, %v214
      %v216 = vadd.f32 %v208, %v215
      %v217 = vadd.f32 %v209, %v215
      %v218 = vadd.f32 %v210, %v215
      %v219 = vadd.f32 %v211, %v215
      %220 = vst.msk [vmem:[%s143] sm:$0xff] %vm149, %v216
      %221 = vst.msk [vmem:[%s143 + $0x8] sm:$0xff] %vm149, %v217
      %222 = vst.msk [vmem:[%s143 + $0x10] sm:$0xff] %vm149, %v218
      %223 = vst.msk [vmem:[%s143 + $0x18] sm:$0x7f] %vm159, %v219
      %p224 = scmp.lt.s32.totalorder %s13, 3
      %s225 = scalar_select %p224, %s13, 3
      %s226 = smul.addr %s225, 4
      %s227 = smul.addr %s226, 8
      %s228 = scalar_lea.vmem %s2, %s227
      // Predicated region
      $region29: #{_lambda_.3} parent=27 // pred_check
        %p229 = pneg %p78
      $region30: #{_lambda_.3} parent=27 // pred_check_branch
        %231 = sbr.rel (%p229) target = $region32
      $region31: #{_lambda_.3} parent=27 // pred_region
        _
      $region32: #{_lambda_.3} parent=27 // pred_fallthru
        _
    $region28: #{_lambda_.3} parent=5 // pred_fallthru
      _
    %p232 = scmp.le.s32.totalorder 2, %s8
    // Predicated region
    $region33: #{_lambda_.3} parent=5 // pred_check
      %p233 = pneg %p232
    $region34: #{_lambda_.3} parent=5 // pred_check_branch
      %235 = sbr.rel (%p233) target = $region36
    $region35: #{_lambda_.3} parent=5 // pred_region
      %s236 = ssub.s32 %s8, 2
      // Predicated region
      $region37: #{_lambda_.3} parent=35 // pred_check
        %p237 = pneg %p84
      $region38: #{_lambda_.3} parent=35 // pred_check_branch
        %239 = sbr.rel (%p237) target = $region40
      $region39: #{_lambda_.3} parent=35 // pred_region
        %p240 = scmp.lt.s32.totalorder %s14, 3
        %s241 = scalar_select %p240, %s14, 3
        %s242 = smul.addr %s241, 4
        %s243 = smul.addr %s242, 8
        %s244 = scalar_lea.vmem %s2, %s243
      $region40: #{_lambda_.3} parent=35 // pred_fallthru
        _
    $region36: #{_lambda_.3} parent=5 // pred_fallthru
      _
  $region6: #{_lambda_.3} parent=0 // loop_footer
    %s12 = sadd.s32 1, %s8
  $region7: #{_lambda_.3} parent=0 // loop_footer_branch
    %7 = sbr.rel target = $region3
  $region8: #{_lambda_.3} parent=0 // loop_exit
    _

// kernel: _lambda_.4
$region0: #{_lambda_.4}
  #allocation0 [shape = 'u32[]', space=smem, size = 0x4, offset = 0x4, fixed_abs, tag = 'smem constant byte address 0x4 - core index']
  #allocation1 [shape = 'u32[144,128]{1,0:T(1,128)}', space=vmem, size = 0x12000, scoped, tag = 'internal scratch']
  %s0 = inlined_call_operand.vmem [shape: f32[4,31,32], index: 0, kind: input, shape index: {}]
  %s1 = inlined_call_operand.vmem [shape: f32[4,1,31], index: 1, kind: input, shape index: {}]
  %s2 = inlined_call_operand.vmem [shape: f32[32,96], index: 2, kind: input, shape index: {}]
  %s3 = inlined_call_operand.vmem [shape: f32[1,96], index: 3, kind: input, shape index: {}]
  %s4 = inlined_call_operand.vmem [shape: f32[32,32], index: 4, kind: input, shape index: {}]
  %s5 = inlined_call_operand.vmem [shape: f32[1,32], index: 5, kind: input, shape index: {}, may-alias: {5,10}]
  %s6 = inlined_call_operand.vmem [shape: f32[2,32], index: 6, kind: input, shape index: {}, may-alias: {6,11}]
  %s7 = inlined_call_operand.vmem [shape: f32[32,64], index: 7, kind: input, shape index: {}]
  %s8 = inlined_call_operand.vmem [shape: f32[1,64], index: 8, kind: input, shape index: {}]
  %s9 = inlined_call_operand.vmem [shape: f32[64,32], index: 9, kind: input, shape index: {}]
  %s10 = inlined_call_operand.vmem [shape: f32[1,32], index: 10, kind: input, shape index: {}, may-alias: {5,10}]
  %s11 = inlined_call_operand.vmem [shape: f32[2,32], index: 11, kind: input, shape index: {}, may-alias: {6,11}]
  %s12 = inlined_call_operand.vmem [shape: f32[4,31,32], index: 12, kind: output, shape index: {}]
  %s13 = sld [smem:[#allocation0]]
  $region81: #{_lambda_.4} parent=0
    _
  %s15 = ssub.s32 1, %s13
  %s16 = scalar_select 0, %s15, %s13
  loop: start=0, step=1, limit=6
  $region2: #{_lambda_.4} parent=0 // loop_pre_header
    _
  $region3: #{_lambda_.4} parent=0 // loop_header
    %s18 = sphi 0, %s22
    %p19 = scmp.ge.s32.totalorder %s18, 6
    %s28 = sphi 0, %s30
    %s31 = sphi 0, %s28
    %s32 = sphi 0, %s31
    %s48 = sphi 0, %s32
    %s54 = sphi 0, %s56
    %s57 = sphi 0, %s54
    %s58 = sphi 0, %s57
    %s74 = sphi 0, %s58
    %s78 = sphi 0, %s78
    %s80 = sphi 0, %s78
    %s81 = sphi 0, %s80
    %s95 = sphi 0, %s81
    %s99 = sphi 0, %s99
    %s101 = sphi 0, %s99
    %s102 = sphi 0, %s101
    %s116 = sphi 0, %s102
    %s120 = sphi 0, %s120
    %s122 = sphi 0, %s120
    %s123 = sphi 0, %s122
    %s137 = sphi 0, %s123
    %s141 = sphi 0, %s141
    %s143 = sphi 0, %s141
    %s144 = sphi 0, %s143
    %s158 = sphi 0, %s144
    %s162 = sphi 0, %s162
    %s164 = sphi 0, %s162
    %s165 = sphi 0, %s164
    %s179 = sphi 0, %s165
    %s183 = sphi 0, %s183
    %s185 = sphi 0, %s183
    %s186 = sphi 0, %s185
    %s200 = sphi 0, %s186
    %s204 = sphi 0, %s204
    %s206 = sphi 0, %s204
    %s207 = sphi 0, %s206
    %s221 = sphi 0, %s207
    %s225 = sphi 0, %s225
    %s227 = sphi 0, %s225
    %s228 = sphi 0, %s227
    %s242 = sphi 0, %s228
    %s246 = sphi 0, %s246
    %s248 = sphi 0, %s246
    %s249 = sphi 0, %s248
    %s263 = sphi 0, %s249
    %s267 = sphi 0, %s267
    %s269 = sphi 0, %s267
    %s270 = sphi 0, %s269
    %s284 = sphi 0, %s270
    %s290 = sphi 0, %s292
    %s293 = sphi 0, %s290
    %s294 = sphi 0, %s293
    %s310 = sphi 0, %s294
  $region4: #{_lambda_.4} parent=0 // loop_header_branch
    %21 = sbr.rel (%p19) target = $region8
  $region5: #{_lambda_.4} parent=0 // loop_body
    %s23 = ssub.s32 %s18, 1
    %s24 = ssub.s32 %s18, 2
    %s25 = sadd.s32 %s18, 1
    %s26 = ssub.s32 %s18, %s25
    %p27 = scmp.eq.s32.totalorder %s26, 0
    %s29 = sadd.s32 %s28, 1
    %s30 = scalar_select %p27, %s28, %s29
    %p33 = pneg %p27
    %p34 = scmp.eq.s32.totalorder %s18, 3
    %p35 = por %p33, %p34
    %p36 = scmp.ne.s32.totalorder %s28, %s31
    %p37 = scmp.eq.s32.totalorder %s18, 0
    %p38 = por %p36, %p37
    %p39 = scmp.ne.s32.totalorder %s28, %s31
    %p40 = scmp.eq.s32.totalorder %s23, 3
    %p41 = por %p39, %p40
    %p42 = scmp.ne.s32.totalorder %s31, %s32
    %p43 = scmp.eq.s32.totalorder %s23, 0
    %p44 = por %p42, %p43
    %p45 = scmp.ne.s32.totalorder %s31, %s32
    %p46 = scmp.eq.s32.totalorder %s24, 3
    %p47 = por %p45, %p46
    %p49 = scmp.ne.s32.totalorder %s32, %s48
    %p50 = scmp.eq.s32.totalorder %s24, 0
    %p51 = por %p49, %p50
    %s52 = ssub.s32 %s18, %s25
    %p53 = scmp.eq.s32.totalorder %s52, 0
    %s55 = sadd.s32 %s54, 1
    %s56 = scalar_select %p53, %s54, %s55
    %p59 = pneg %p53
    %p60 = scmp.eq.s32.totalorder %s18, 3
    %p61 = por %p59, %p60
    %p62 = scmp.ne.s32.totalorder %s54, %s57
    %p63 = scmp.eq.s32.totalorder %s18, 0
    %p64 = por %p62, %p63
    %p65 = scmp.ne.s32.totalorder %s54, %s57
    %p66 = scmp.eq.s32.totalorder %s23, 3
    %p67 = por %p65, %p66
    %p68 = scmp.ne.s32.totalorder %s57, %s58
    %p69 = scmp.eq.s32.totalorder %s23, 0
    %p70 = por %p68, %p69
    %p71 = scmp.ne.s32.totalorder %s57, %s58
    %p72 = scmp.eq.s32.totalorder %s24, 3
    %p73 = por %p71, %p72
    %p75 = scmp.ne.s32.totalorder %s58, %s74
    %p76 = scmp.eq.s32.totalorder %s24, 0
    %p77 = por %p75, %p76
    %s79 = sadd.s32 %s78, 1
    %p82 = scmp.eq.s32.totalorder %s18, 3
    %p83 = scmp.ne.s32.totalorder %s78, %s80
    %p84 = scmp.eq.s32.totalorder %s18, 0
    %p85 = por %p83, %p84
    %p86 = scmp.ne.s32.totalorder %s78, %s80
    %p87 = scmp.eq.s32.totalorder %s23, 3
    %p88 = por %p86, %p87
    %p89 = scmp.ne.s32.totalorder %s80, %s81
    %p90 = scmp.eq.s32.totalorder %s23, 0
    %p91 = por %p89, %p90
    %p92 = scmp.ne.s32.totalorder %s80, %s81
    %p93 = scmp.eq.s32.totalorder %s24, 3
    %p94 = por %p92, %p93
    %p96 = scmp.ne.s32.totalorder %s81, %s95
    %p97 = scmp.eq.s32.totalorder %s24, 0
    %p98 = por %p96, %p97
    %s100 = sadd.s32 %s99, 1
    %p103 = scmp.eq.s32.totalorder %s18, 3
    %p104 = scmp.ne.s32.totalorder %s99, %s101
    %p105 = scmp.eq.s32.totalorder %s18, 0
    %p106 = por %p104, %p105
    %p107 = scmp.ne.s32.totalorder %s99, %s101
    %p108 = scmp.eq.s32.totalorder %s23, 3
    %p109 = por %p107, %p108
    %p110 = scmp.ne.s32.totalorder %s101, %s102
    %p111 = scmp.eq.s32.totalorder %s23, 0
    %p112 = por %p110, %p111
    %p113 = scmp.ne.s32.totalorder %s101, %s102
    %p114 = scmp.eq.s32.totalorder %s24, 3
    %p115 = por %p113, %p114
    %p117 = scmp.ne.s32.totalorder %s102, %s116
    %p118 = scmp.eq.s32.totalorder %s24, 0
    %p119 = por %p117, %p118
    %s121 = sadd.s32 %s120, 1
    %p124 = scmp.eq.s32.totalorder %s18, 3
    %p125 = scmp.ne.s32.totalorder %s120, %s122
    %p126 = scmp.eq.s32.totalorder %s18, 0
    %p127 = por %p125, %p126
    %p128 = scmp.ne.s32.totalorder %s120, %s122
    %p129 = scmp.eq.s32.totalorder %s23, 3
    %p130 = por %p128, %p129
    %p131 = scmp.ne.s32.totalorder %s122, %s123
    %p132 = scmp.eq.s32.totalorder %s23, 0
    %p133 = por %p131, %p132
    %p134 = scmp.ne.s32.totalorder %s122, %s123
    %p135 = scmp.eq.s32.totalorder %s24, 3
    %p136 = por %p134, %p135
    %p138 = scmp.ne.s32.totalorder %s123, %s137
    %p139 = scmp.eq.s32.totalorder %s24, 0
    %p140 = por %p138, %p139
    %s142 = sadd.s32 %s141, 1
    %p145 = scmp.eq.s32.totalorder %s18, 3
    %p146 = scmp.ne.s32.totalorder %s141, %s143
    %p147 = scmp.eq.s32.totalorder %s18, 0
    %p148 = por %p146, %p147
    %p149 = scmp.ne.s32.totalorder %s141, %s143
    %p150 = scmp.eq.s32.totalorder %s23, 3
    %p151 = por %p149, %p150
    %p152 = scmp.ne.s32.totalorder %s143, %s144
    %p153 = scmp.eq.s32.totalorder %s23, 0
    %p154 = por %p152, %p153
    %p155 = scmp.ne.s32.totalorder %s143, %s144
    %p156 = scmp.eq.s32.totalorder %s24, 3
    %p157 = por %p155, %p156
    %p159 = scmp.ne.s32.totalorder %s144, %s158
    %p160 = scmp.eq.s32.totalorder %s24, 0
    %p161 = por %p159, %p160
    %s163 = sadd.s32 %s162, 1
    %p166 = scmp.eq.s32.totalorder %s18, 3
    %p167 = scmp.ne.s32.totalorder %s162, %s164
    %p168 = scmp.eq.s32.totalorder %s18, 0
    %p169 = por %p167, %p168
    %p170 = scmp.ne.s32.totalorder %s162, %s164
    %p171 = scmp.eq.s32.totalorder %s23, 3
    %p172 = por %p170, %p171
    %p173 = scmp.ne.s32.totalorder %s164, %s165
    %p174 = scmp.eq.s32.totalorder %s23, 0
    %p175 = por %p173, %p174
    %p176 = scmp.ne.s32.totalorder %s164, %s165
    %p177 = scmp.eq.s32.totalorder %s24, 3
    %p178 = por %p176, %p177
    %p180 = scmp.ne.s32.totalorder %s165, %s179
    %p181 = scmp.eq.s32.totalorder %s24, 0
    %p182 = por %p180, %p181
    %s184 = sadd.s32 %s183, 1
    %p187 = scmp.eq.s32.totalorder %s18, 3
    %p188 = scmp.ne.s32.totalorder %s183, %s185
    %p189 = scmp.eq.s32.totalorder %s18, 0
    %p190 = por %p188, %p189
    %p191 = scmp.ne.s32.totalorder %s183, %s185
    %p192 = scmp.eq.s32.totalorder %s23, 3
    %p193 = por %p191, %p192
    %p194 = scmp.ne.s32.totalorder %s185, %s186
    %p195 = scmp.eq.s32.totalorder %s23, 0
    %p196 = por %p194, %p195
    %p197 = scmp.ne.s32.totalorder %s185, %s186
    %p198 = scmp.eq.s32.totalorder %s24, 3
    %p199 = por %p197, %p198
    %p201 = scmp.ne.s32.totalorder %s186, %s200
    %p202 = scmp.eq.s32.totalorder %s24, 0
    %p203 = por %p201, %p202
    %s205 = sadd.s32 %s204, 1
    %p208 = scmp.eq.s32.totalorder %s18, 3
    %p209 = scmp.ne.s32.totalorder %s204, %s206
    %p210 = scmp.eq.s32.totalorder %s18, 0
    %p211 = por %p209, %p210
    %p212 = scmp.ne.s32.totalorder %s204, %s206
    %p213 = scmp.eq.s32.totalorder %s23, 3
    %p214 = por %p212, %p213
    %p215 = scmp.ne.s32.totalorder %s206, %s207
    %p216 = scmp.eq.s32.totalorder %s23, 0
    %p217 = por %p215, %p216
    %p218 = scmp.ne.s32.totalorder %s206, %s207
    %p219 = scmp.eq.s32.totalorder %s24, 3
    %p220 = por %p218, %p219
    %p222 = scmp.ne.s32.totalorder %s207, %s221
    %p223 = scmp.eq.s32.totalorder %s24, 0
    %p224 = por %p222, %p223
    %s226 = sadd.s32 %s225, 1
    %p229 = scmp.eq.s32.totalorder %s18, 3
    %p230 = scmp.ne.s32.totalorder %s225, %s227
    %p231 = scmp.eq.s32.totalorder %s18, 0
    %p232 = por %p230, %p231
    %p233 = scmp.ne.s32.totalorder %s225, %s227
    %p234 = scmp.eq.s32.totalorder %s23, 3
    %p235 = por %p233, %p234
    %p236 = scmp.ne.s32.totalorder %s227, %s228
    %p237 = scmp.eq.s32.totalorder %s23, 0
    %p238 = por %p236, %p237
    %p239 = scmp.ne.s32.totalorder %s227, %s228
    %p240 = scmp.eq.s32.totalorder %s24, 3
    %p241 = por %p239, %p240
    %p243 = scmp.ne.s32.totalorder %s228, %s242
    %p244 = scmp.eq.s32.totalorder %s24, 0
    %p245 = por %p243, %p244
    %s247 = sadd.s32 %s246, 1
    %p250 = scmp.eq.s32.totalorder %s18, 3
    %p251 = scmp.ne.s32.totalorder %s246, %s248
    %p252 = scmp.eq.s32.totalorder %s18, 0
    %p253 = por %p251, %p252
    %p254 = scmp.ne.s32.totalorder %s246, %s248
    %p255 = scmp.eq.s32.totalorder %s23, 3
    %p256 = por %p254, %p255
    %p257 = scmp.ne.s32.totalorder %s248, %s249
    %p258 = scmp.eq.s32.totalorder %s23, 0
    %p259 = por %p257, %p258
    %p260 = scmp.ne.s32.totalorder %s248, %s249
    %p261 = scmp.eq.s32.totalorder %s24, 3
    %p262 = por %p260, %p261
    %p264 = scmp.ne.s32.totalorder %s249, %s263
    %p265 = scmp.eq.s32.totalorder %s24, 0
    %p266 = por %p264, %p265
    %s268 = sadd.s32 %s267, 1
    %p271 = scmp.eq.s32.totalorder %s18, 3
    %p272 = scmp.ne.s32.totalorder %s267, %s269
    %p273 = scmp.eq.s32.totalorder %s18, 0
    %p274 = por %p272, %p273
    %p275 = scmp.ne.s32.totalorder %s267, %s269
    %p276 = scmp.eq.s32.totalorder %s23, 3
    %p277 = por %p275, %p276
    %p278 = scmp.ne.s32.totalorder %s269, %s270
    %p279 = scmp.eq.s32.totalorder %s23, 0
    %p280 = por %p278, %p279
    %p281 = scmp.ne.s32.totalorder %s269, %s270
    %p282 = scmp.eq.s32.totalorder %s24, 3
    %p283 = por %p281, %p282
    %p285 = scmp.ne.s32.totalorder %s270, %s284
    %p286 = scmp.eq.s32.totalorder %s24, 0
    %p287 = por %p285, %p286
    %s288 = ssub.s32 %s18, %s25
    %p289 = scmp.eq.s32.totalorder %s288, 0
    %s291 = sadd.s32 %s290, 1
    %s292 = scalar_select %p289, %s290, %s291
    %p295 = pneg %p289
    %p296 = scmp.eq.s32.totalorder %s18, 3
    %p297 = por %p295, %p296
    %p298 = scmp.ne.s32.totalorder %s290, %s293
    %p299 = scmp.eq.s32.totalorder %s18, 0
    %p300 = por %p298, %p299
    %p301 = scmp.ne.s32.totalorder %s290, %s293
    %p302 = scmp.eq.s32.totalorder %s23, 3
    %p303 = por %p301, %p302
    %p304 = scmp.ne.s32.totalorder %s293, %s294
    %p305 = scmp.eq.s32.totalorder %s23, 0
    %p306 = por %p304, %p305
    %p307 = scmp.ne.s32.totalorder %s293, %s294
    %p308 = scmp.eq.s32.totalorder %s24, 3
    %p309 = por %p307, %p308
    %p311 = scmp.ne.s32.totalorder %s294, %s310
    %p312 = scmp.eq.s32.totalorder %s24, 0
    %p313 = por %p311, %p312
    %p314 = scmp.le.s32.totalorder 1, %s18
    %p315 = scmp.lt.s32.totalorder %s18, 5
    %p316 = pnand %p314, %p315
    %p317 = pneg %p316
    // Predicated region
    $region9: #{_lambda_.4} parent=5 // pred_check
      _
    $region10: #{_lambda_.4} parent=5 // pred_check_branch
      %319 = sbr.rel (%p316) target = $region12
    $region11: #{_lambda_.4} parent=5 // pred_region
      %s320 = ssub.s32 %s18, 1
      // Predicated region
      $region13: #{_lambda_.4} parent=11 // pred_check
        %p321 = pneg %p91
      $region14: #{_lambda_.4} parent=11 // pred_check_branch
        %323 = sbr.rel (%p321) target = $region16
      $region15: #{_lambda_.4} parent=11 // pred_region
        _
      $region16: #{_lambda_.4} parent=11 // pred_fallthru
        _
      // Predicated region
      $region17: #{_lambda_.4} parent=11 // pred_check
        %p324 = pneg %p112
      $region18: #{_lambda_.4} parent=11 // pred_check_branch
        %326 = sbr.rel (%p324) target = $region20
      $region19: #{_lambda_.4} parent=11 // pred_region
        _
      $region20: #{_lambda_.4} parent=11 // pred_fallthru
        _
      // Predicated region
      $region21: #{_lambda_.4} parent=11 // pred_check
        %p327 = pneg %p133
      $region22: #{_lambda_.4} parent=11 // pred_check_branch
        %329 = sbr.rel (%p327) target = $region24
      $region23: #{_lambda_.4} parent=11 // pred_region
        _
      $region24: #{_lambda_.4} parent=11 // pred_fallthru
        _
      // Predicated region
      $region25: #{_lambda_.4} parent=11 // pred_check
        %p330 = pneg %p154
      $region26: #{_lambda_.4} parent=11 // pred_check_branch
        %332 = sbr.rel (%p330) target = $region28
      $region27: #{_lambda_.4} parent=11 // pred_region
        _
      $region28: #{_lambda_.4} parent=11 // pred_fallthru
        _
      // Predicated region
      $region29: #{_lambda_.4} parent=11 // pred_check
        %p333 = pneg %p175
      $region30: #{_lambda_.4} parent=11 // pred_check_branch
        %335 = sbr.rel (%p333) target = $region32
      $region31: #{_lambda_.4} parent=11 // pred_region
        _
      $region32: #{_lambda_.4} parent=11 // pred_fallthru
        _
      // Predicated region
      $region33: #{_lambda_.4} parent=11 // pred_check
        %p336 = pneg %p196
      $region34: #{_lambda_.4} parent=11 // pred_check_branch
        %338 = sbr.rel (%p336) target = $region36
      $region35: #{_lambda_.4} parent=11 // pred_region
        _
      $region36: #{_lambda_.4} parent=11 // pred_fallthru
        _
      // Predicated region
      $region37: #{_lambda_.4} parent=11 // pred_check
        %p339 = pneg %p217
      $region38: #{_lambda_.4} parent=11 // pred_check_branch
        %341 = sbr.rel (%p339) target = $region40
      $region39: #{_lambda_.4} parent=11 // pred_region
        _
      $region40: #{_lambda_.4} parent=11 // pred_fallthru
        _
      // Predicated region
      $region41: #{_lambda_.4} parent=11 // pred_check
        %p342 = pneg %p238
      $region42: #{_lambda_.4} parent=11 // pred_check_branch
        %344 = sbr.rel (%p342) target = $region44
      $region43: #{_lambda_.4} parent=11 // pred_region
        _
      $region44: #{_lambda_.4} parent=11 // pred_fallthru
        _
      // Predicated region
      $region45: #{_lambda_.4} parent=11 // pred_check
        %p345 = pneg %p259
      $region46: #{_lambda_.4} parent=11 // pred_check_branch
        %347 = sbr.rel (%p345) target = $region48
      $region47: #{_lambda_.4} parent=11 // pred_region
        _
      $region48: #{_lambda_.4} parent=11 // pred_fallthru
        _
      // Predicated region
      $region49: #{_lambda_.4} parent=11 // pred_check
        %p348 = pneg %p280
      $region50: #{_lambda_.4} parent=11 // pred_check_branch
        %350 = sbr.rel (%p348) target = $region52
      $region51: #{_lambda_.4} parent=11 // pred_region
        _
      $region52: #{_lambda_.4} parent=11 // pred_fallthru
        _
    $region12: #{_lambda_.4} parent=5 // pred_fallthru
      _
    %p351 = scmp.lt.s32.totalorder %s18, 4
    // Predicated region
    $region53: #{_lambda_.4} parent=5 // pred_check
      %p352 = pneg %p351
    $region54: #{_lambda_.4} parent=5 // pred_check_branch
      %354 = sbr.rel (%p352) target = $region56
    $region55: #{_lambda_.4} parent=5 // pred_region
      // Predicated region
      $region57: #{_lambda_.4} parent=55 // pred_check
        %p355 = pneg %p38
      $region58: #{_lambda_.4} parent=55 // pred_check_branch
        %357 = sbr.rel (%p355) target = $region60
      $region59: #{_lambda_.4} parent=55 // pred_region
        %p358 = scmp.lt.s32.totalorder %s18, 3
        %s359 = scalar_select %p358, %s18, 3
        %s360 = smul.addr %s359, 4
        %s361 = smul.addr %s360, 8
        %s362 = scalar_lea.vmem %s0, %s361
      $region60: #{_lambda_.4} parent=55 // pred_fallthru
        _
      // Predicated region
      $region61: #{_lambda_.4} parent=55 // pred_check
        %p363 = pneg %p64
      $region62: #{_lambda_.4} parent=55 // pred_check_branch
        %365 = sbr.rel (%p363) target = $region64
      $region63: #{_lambda_.4} parent=55 // pred_region
        %p366 = scmp.lt.s32.totalorder %s18, 3
        %s367 = scalar_select %p366, %s18, 3
        %s368 = scalar_lea.vmem %s1, %s367
      $region64: #{_lambda_.4} parent=55 // pred_fallthru
        _
    $region56: #{_lambda_.4} parent=5 // pred_fallthru
      _
    %p369 = scmp.le.s32.totalorder 1, %s18
    %p370 = scmp.lt.s32.totalorder %s18, 5
    %p371 = pnand %p369, %p370
    %p372 = pneg %p371
    // Predicated region
    $region65: #{_lambda_.4} parent=5 // pred_check
      _
    $region66: #{_lambda_.4} parent=5 // pred_check_branch
      %374 = sbr.rel (%p371) target = $region68
    $region67: #{_lambda_.4} parent=5 // pred_region
      %s375 = ssub.s32 %s18, 1
      %p376 = scmp.lt.s32.totalorder %s23, 3
      %s377 = scalar_select %p376, %s23, 3
      %s378 = smul.addr %s377, 4
      %s379 = smul.addr %s378, 8
      %s380 = scalar_lea.vmem %s0, %s379
      %p381 = pneg %p44
      %p382 = pneg %p41
      %p383 = scmp.lt.s32.totalorder %s23, 3
      %s384 = scalar_select %p383, %s23, 3
      %s385 = scalar_lea.vmem %s1, %s384
      %p386 = pneg %p70
      %p387 = pneg %p67
      %p388 = pneg %p91
      %p389 = pneg %p88
      %p390 = pneg %p112
      %p391 = pneg %p109
      %p392 = pneg %p133
      %p393 = pneg %p130
      %p394 = pneg %p154
      %p395 = pneg %p151
      %p396 = pneg %p175
      %p397 = pneg %p172
      %p398 = pneg %p196
      %p399 = pneg %p193
      %p400 = pneg %p217
      %p401 = pneg %p214
      %p402 = pneg %p238
      %p403 = pneg %p235
      %p404 = pneg %p259
      %p405 = pneg %p256
      %p406 = pneg %p280
      %p407 = pneg %p277
      %p408 = pneg %p306
      %p409 = pneg %p303
      %p410 = scmp.lt.s32.totalorder %s23, 3
      %s411 = scalar_select %p410, %s23, 3
      %s412 = smul.addr %s411, 4
      %s413 = smul.addr %s412, 8
      %s414 = scalar_lea.vmem %s12, %s413
      %p415 = scmp.lt.s32.totalorder %s23, 3
      %s416 = scalar_select %p415, %s23, 3
      %s417 = smul.addr %s416, 4
      %s418 = smul.addr %s417, 8
      %s419 = scalar_lea.vmem %s0, %s418
      %p420 = scmp.lt.s32.totalorder %s23, 3
      %s421 = scalar_select %p420, %s23, 3
      %s422 = scalar_lea.vmem %s1, %s421
      %p423 = scmp.lt.s32.totalorder %s23, 3
      %s424 = scalar_select %p423, %s23, 3
      %s425 = smul.addr %s424, 4
      %s426 = smul.addr %s425, 8
      %s427 = scalar_lea.vmem %s12, %s426
      %v429 = vld [vmem:[%s419] sm:$0xff]
      %v430 = vld [vmem:[%s419 + $0x8] sm:$0xff]
      %v431 = vld [vmem:[%s419 + $0x10] sm:$0xff]
      %v432 = vld [vmem:[%s419 + $0x18] sm:$0x7f]
      %v433 = vld [vmem:[%s422] sm:$0x1]
      %v434 = vld [vmem:[%s2] sm:$0xff]
      %v435 = vld [vmem:[%s2 + $0x8] sm:$0xff]
      %v436 = vld [vmem:[%s2 + $0x10] sm:$0xff]
      %v437 = vld [vmem:[%s2 + $0x18] sm:$0xff]
      %v438 = vpack.c.bf16 %v430, %v429
      %v439 = vpack.c.bf16 %v432, %v431
      %v440 = vpack.c.bf16 %v435, %v434
      %v441 = vpack.c.bf16 %v437, %v436
      %v442 = vld [vmem:[%s3] sm:$0x1]
      %v444 = vlaneseq
      %v445 = vshrl.u32 %v444, 7
      %v446 = vsub.s32 0, %v445
      %v447 = vrot.slane %v442, %v446
      %vm449 = vcmask 261120
      %v451 = vsel %vm449, %v438, 0
      %v454 = vsel %vm449, %v439, 0
      %456 = vmatprep.subr.bf16.mxu0 0
      %457 = vmatpush1.bf16.msra.mxu0 %v440
      %458 = vmatprep.subr.bf16.mxu0 0
      %459 = vmatpush1.bf16.msra.mxu0 %v441
      %460 = vmatprep.subr.bf16.mxu0 0
      %461 = vmatpush1.bf16.msra.mxu0 0
      %462 = vmatprep.subr.bf16.mxu0 0
      %463 = vmatpush1.bf16.msra.mxu0 0
      %464 = vmatprep.subr.bf16.mxu0 0
      %465 = vmatpush1.bf16.msra.mxu0 0
      %466 = vmatprep.subr.bf16.mxu0 0
      %467 = vmatpush1.bf16.msra.mxu0 0
      %468 = vmatprep.subr.bf16.mxu0 0
      %469 = vmatpush1.bf16.msra.mxu0 0
      %470 = vmatprep.subr.bf16.mxu0 0
      %471 = vmatpush1.bf16.msra.mxu0 0
      %472 = vmatprep.subr.bf16.mxu0 0
      %473 = vmatpush1.bf16.msra.mxu0 0
      %474 = vmatprep.subr.bf16.mxu0 0
      %475 = vmatpush1.bf16.msra.mxu0 0
      %476 = vmatprep.subr.bf16.mxu0 0
      %477 = vmatpush1.bf16.msra.mxu0 0
      %478 = vmatprep.subr.bf16.mxu0 0
      %479 = vmatpush1.bf16.msra.mxu0 0
      %480 = vmatprep.subr.bf16.mxu0 0
      %481 = vmatpush1.bf16.msra.mxu0 0
      %482 = vmatprep.subr.bf16.mxu0 0
      %483 = vmatpush1.bf16.msra.mxu0 0
      %484 = vmatprep.subr.bf16.mxu0 0
      %485 = vmatpush1.bf16.msra.mxu0 0
      %486 = vmatprep.subr.bf16.mxu0 0
      %487 = vmatpush1.bf16.msra.mxu0 0
      %488 = vmatprep.mubr.bf16.mxu0 0
      %489 = vmatmul.mubr.bf16.gmra.mrb[0].mxu0 %v451
      %v490 = vpop.f32.mrb[0].mxu0
      %v491 = vadd.f32 %v447, %v490
      %v492 = vpop.f32.mrb[0].mxu0
      %v493 = vpop.f32.mrb[0].mxu0
      %v494 = vadd.f32 %v447, %v493
      %v495 = vpop.f32.mrb[0].mxu0
      %496 = vmatprep.mubr.bf16.mxu0 0
      %497 = vmatmul.mubr.bf16.gmra.mrb[0].mxu0 %v454
      %v498 = vpop.f32.mrb[0].mxu0
      %v499 = vadd.f32 %v447, %v498
      %v500 = vpop.f32.mrb[0].mxu0
      %v501 = vpop.f32.mrb[0].mxu0
      %v502 = vadd.f32 %v447, %v501
      %v503 = vpop.f32.mrb[0].mxu0
      %504 = vdwg.mxu0
      %v505 = vpack.c.bf16 %v494, %v491
      %v506 = vpack.c.bf16 %v502, %v499
      %509 = vrot.lane.b32.xlu0 %v505, 96
      %v510 = vpop.permute.xlu0 %509
      %511 = vrot.lane.b32.xlu0 %v506, 96
      %v512 = vpop.permute.xlu0 %511
      %vm513 = vcmask 130048
      %v515 = vsel %vm513, %v505, 0
      %v518 = vsel %vm513, %v506, 0
      %v521 = vsel %vm513, %v510, 0
      %v524 = vsel %vm513, %v512, 0
      %526 = vmatprep.subr.bf16.mxu0 0
      %527 = vmatpush1.bf16.xpose.msra.mxu0 %v521
      %528 = vmatprep.subr.bf16.mxu0 0
      %529 = vmatpush1.bf16.xpose.msra.mxu0 %v524
      %530 = vmatprep.subr.bf16.mxu0 0
      %531 = vmatpush1.bf16.xpose.msra.mxu0 0
      %532 = vmatprep.subr.bf16.mxu0 0
      %533 = vmatpush1.bf16.xpose.msra.mxu0 0
      %534 = vmatprep.subr.bf16.mxu0 0
      %535 = vmatpush1.bf16.xpose.msra.mxu0 0
      %536 = vmatprep.subr.bf16.mxu0 0
      %537 = vmatpush1.bf16.xpose.msra.mxu0 0
      %538 = vmatprep.subr.bf16.mxu0 0
      %539 = vmatpush1.bf16.xpose.msra.mxu0 0
      %540 = vmatprep.subr.bf16.mxu0 0
      %541 = vmatpush1.bf16.xpose.msra.mxu0 0
      %542 = vmatprep.subr.bf16.mxu0 0
      %543 = vmatpush1.bf16.xpose.msra.mxu0 0
      %544 = vmatprep.subr.bf16.mxu0 0
      %545 = vmatpush1.bf16.xpose.msra.mxu0 0
      %546 = vmatprep.subr.bf16.mxu0 0
      %547 = vmatpush1.bf16.xpose.msra.mxu0 0
      %548 = vmatprep.subr.bf16.mxu0 0
      %549 = vmatpush1.bf16.xpose.msra.mxu0 0
      %550 = vmatprep.subr.bf16.mxu0 0
      %551 = vmatpush1.bf16.xpose.msra.mxu0 0
      %552 = vmatprep.subr.bf16.mxu0 0
      %553 = vmatpush1.bf16.xpose.msra.mxu0 0
      %554 = vmatprep.subr.bf16.mxu0 0
      %555 = vmatpush1.bf16.xpose.msra.mxu0 0
      %556 = vmatprep.subr.bf16.mxu0 0
      %557 = vmatpush1.bf16.xpose.msra.mxu0 0
      %558 = vmatprep.mubr.bf16.mxu0 0
      %559 = vmatmul.mubr.bf16.gmra.mrb[0].mxu0 %v515
      %v560 = vpop.f32.mrb[0].mxu0
      %v561 = vadd.f32 0.0, %v560
      %v562 = vpop.f32.mrb[0].mxu0
      %v563 = vpop.f32.mrb[0].mxu0
      %v564 = vadd.f32 0.0, %v563
      %v565 = vpop.f32.mrb[0].mxu0
      %566 = vmatprep.mubr.bf16.mxu0 0
      %567 = vmatmul.mubr.bf16.gmra.mrb[0].mxu0 %v518
      %v568 = vpop.f32.mrb[0].mxu0
      %v569 = vadd.f32 0.0, %v568
      %v570 = vpop.f32.mrb[0].mxu0
      %v571 = vpop.f32.mrb[0].mxu0
      %v572 = vadd.f32 0.0, %v571
      %v573 = vpop.f32.mrb[0].mxu0
      %574 = vdwg.mxu0
      %v575 = vmul.f32 %v561, 0.25
      %v576 = vmul.f32 %v564, 0.25
      %v577 = vmul.f32 %v569, 0.25
      %v578 = vmul.f32 %v572, 0.25
      %v580 = vlaneseq
      %v581 = vshrl.u32 %v580, 7
      %v582 = vsub.s32 0, %v581
      %v583 = vrot.slane %v433, %v582
      %v585 = vadd.f32 %v575, %v583
      %v586 = vadd.f32 %v576, %v583
      %v587 = vadd.f32 %v577, %v583
      %v588 = vadd.f32 %v578, %v583
      %vm589 = vcmask 252928
      %v590 = vsel %vm589, %v585, -inf
      %591 = vmax.xlane.f32.xlu0 %v590
      %v592 = vpop.xlane.xlu0 %591
      %v593 = vsel %vm589, %v586, -inf
      %594 = vmax.xlane.f32.xlu0 %v593
      %v595 = vpop.xlane.xlu0 %594
      %v596 = vsel %vm589, %v587, -inf
      %597 = vmax.xlane.f32.xlu0 %v596
      %v598 = vpop.xlane.xlu0 %597
      %vm599 = vcmask 251904
      %v600 = vsel %vm599, %v588, -inf
      %601 = vmax.xlane.f32.xlu0 %v600
      %v602 = vpop.xlane.xlu0 %601
      %v603 = vsub.f32 %v585, %v592
      %v604 = vsub.f32 %v586, %v595
      %v605 = vsub.f32 %v587, %v598
      %v606 = vsub.f32 %v588, %v602
      %v607 = vmul.f32 %v603, 1.442695
      %v608 = vpow.pop %v607
      %v609 = vmul.f32 %v604, 1.442695
      %v610 = vpow.pop %v609
      %v611 = vmul.f32 %v605, 1.442695
      %v612 = vpow.pop %v611
      %v613 = vmul.f32 %v606, 1.442695
      %v614 = vpow.pop %v613
      %v615 = vsel %vm589, %v608, 0.0
      %616 = vadd.xlane.f32.xlu0 %v615
      %v617 = vpop.xlane.xlu0 %616
      %v618 = vsel %vm589, %v610, 0.0
      %619 = vadd.xlane.f32.xlu0 %v618
      %v620 = vpop.xlane.xlu0 %619
      %v621 = vsel %vm589, %v612, 0.0
      %622 = vadd.xlane.f32.xlu0 %v621
      %v623 = vpop.xlane.xlu0 %622
      %v624 = vsel %vm599, %v614, 0.0
      %625 = vadd.xlane.f32.xlu0 %v624
      %v626 = vpop.xlane.xlu0 %625
      %v627 = vrcp.pop %v617
      %v628 = vrcp.pop %v620
      %v629 = vrcp.pop %v623
      %v630 = vrcp.pop %v626
      %v631 = vmul.f32 %v608, %v627
      %v632 = vmul.f32 %v610, %v628
      %v633 = vmul.f32 %v612, %v629
      %v634 = vmul.f32 %v614, %v630
      %v635 = vpack.c.bf16 %v632, %v631
      %v636 = vpack.c.bf16 %v634, %v633
      %637 = vrot.lane.b32.xlu0 %v505, 64
      %v638 = vpop.permute.xlu0 %637
      %639 = vrot.lane.b32.xlu0 %v506, 64
      %v640 = vpop.permute.xlu0 %639
      %v643 = vsel %vm589, %v635, 0
      %v646 = vsel %vm589, %v636, 0
      %vm648 = vcmask 1046528
      %vm649 = vcmask 1047552
      %v650 = vsel %vm648, 4294967295, 65535
      %v651 = vsel %vm649, %v650, 0
      %v653 = vand.u32 %v640, %v651
      %655 = vmatprep.subr.bf16.mxu0 0
      %656 = vmatpush1.bf16.msra.mxu0 %v638
      %657 = vmatprep.subr.bf16.mxu0 0
      %658 = vmatpush1.bf16.msra.mxu0 %v653
      %659 = vmatprep.subr.bf16.mxu0 0
      %660 = vmatpush1.bf16.msra.mxu0 0
      %661 = vmatprep.subr.bf16.mxu0 0
      %662 = vmatpush1.bf16.msra.mxu0 0
      %663 = vmatprep.subr.bf16.mxu0 0
      %664 = vmatpush1.bf16.msra.mxu0 0
      %665 = vmatprep.subr.bf16.mxu0 0
      %666 = vmatpush1.bf16.msra.mxu0 0
      %667 = vmatprep.subr.bf16.mxu0 0
      %668 = vmatpush1.bf16.msra.mxu0 0
      %669 = vmatprep.subr.bf16.mxu0 0
      %670 = vmatpush1.bf16.msra.mxu0 0
      %671 = vmatprep.subr.bf16.mxu0 0
      %672 = vmatpush1.bf16.msra.mxu0 0
      %673 = vmatprep.subr.bf16.mxu0 0
      %674 = vmatpush1.bf16.msra.mxu0 0
      %675 = vmatprep.subr.bf16.mxu0 0
      %676 = vmatpush1.bf16.msra.mxu0 0
      %677 = vmatprep.subr.bf16.mxu0 0
      %678 = vmatpush1.bf16.msra.mxu0 0
      %679 = vmatprep.subr.bf16.mxu0 0
      %680 = vmatpush1.bf16.msra.mxu0 0
      %681 = vmatprep.subr.bf16.mxu0 0
      %682 = vmatpush1.bf16.msra.mxu0 0
      %683 = vmatprep.subr.bf16.mxu0 0
      %684 = vmatpush1.bf16.msra.mxu0 0
      %685 = vmatprep.subr.bf16.mxu0 0
      %686 = vmatpush1.bf16.msra.mxu0 0
      %687 = vmatprep.mubr.bf16.mxu0 0
      %688 = vmatmul.mubr.bf16.gmra.mrb[0].mxu0 %v643
      %v689 = vpop.f32.mrb[0].mxu0
      %v690 = vadd.f32 0.0, %v689
      %v691 = vpop.f32.mrb[0].mxu0
      %v692 = vpop.f32.mrb[0].mxu0
      %v693 = vadd.f32 0.0, %v692
      %v694 = vpop.f32.mrb[0].mxu0
      %695 = vmatprep.mubr.bf16.mxu0 0
      %696 = vmatmul.mubr.bf16.gmra.mrb[0].mxu0 %v646
      %v697 = vpop.f32.mrb[0].mxu0
      %v698 = vadd.f32 0.0, %v697
      %v699 = vpop.f32.mrb[0].mxu0
      %v700 = vpop.f32.mrb[0].mxu0
      %v701 = vadd.f32 0.0, %v700
      %v702 = vpop.f32.mrb[0].mxu0
      %703 = vdwg.mxu0
      %v704 = vld [vmem:[%s4] sm:$0xff]
      %v705 = vld [vmem:[%s4 + $0x8] sm:$0xff]
      %v706 = vpack.c.bf16 %v693, %v690
      %v707 = vpack.c.bf16 %v701, %v698
      %v708 = vpack.c.bf16 %v705, %v704
      %709 = vrot.lane.b32.xlu0 %v505, 112
      %v710 = vpop.permute.xlu0 %709
      %711 = vrot.lane.b32.xlu0 %v506, 112
      %v712 = vpop.permute.xlu0 %711
      %713 = vrot.lane.b32.xlu0 %v505, 80
      %v714 = vpop.permute.xlu0 %713
      %715 = vrot.lane.b32.xlu0 %v506, 80
      %v716 = vpop.permute.xlu0 %715
      %v718 = vsel %vm513, %v710, 0
      %v721 = vsel %vm513, %v712, 0
      %v724 = vsel %vm513, %v714, 0
      %v727 = vsel %vm513, %v716, 0
      %729 = vmatprep.subr.bf16.mxu0 0
      %730 = vmatpush1.bf16.xpose.msra.mxu0 %v724
      %731 = vmatprep.subr.bf16.mxu0 0
      %732 = vmatpush1.bf16.xpose.msra.mxu0 %v727
      %733 = vmatprep.subr.bf16.mxu0 0
      %734 = vmatpush1.bf16.xpose.msra.mxu0 0
      %735 = vmatprep.subr.bf16.mxu0 0
      %736 = vmatpush1.bf16.xpose.msra.mxu0 0
      %737 = vmatprep.subr.bf16.mxu0 0
      %738 = vmatpush1.bf16.xpose.msra.mxu0 0
      %739 = vmatprep.subr.bf16.mxu0 0
      %740 = vmatpush1.bf16.xpose.msra.mxu0 0
      %741 = vmatprep.subr.bf16.mxu0 0
      %742 = vmatpush1.bf16.xpose.msra.mxu0 0
      %743 = vmatprep.subr.bf16.mxu0 0
      %744 = vmatpush1.bf16.xpose.msra.mxu0 0
      %745 = vmatprep.subr.bf16.mxu0 0
      %746 = vmatpush1.bf16.xpose.msra.mxu0 0
      %747 = vmatprep.subr.bf16.mxu0 0
      %748 = vmatpush1.bf16.xpose.msra.mxu0 0
      %749 = vmatprep.subr.bf16.mxu0 0
      %750 = vmatpush1.bf16.xpose.msra.mxu0 0
      %751 = vmatprep.subr.bf16.mxu0 0
      %752 = vmatpush1.bf16.xpose.msra.mxu0 0
      %753 = vmatprep.subr.bf16.mxu0 0
      %754 = vmatpush1.bf16.xpose.msra.mxu0 0
      %755 = vmatprep.subr.bf16.mxu0 0
      %756 = vmatpush1.bf16.xpose.msra.mxu0 0
      %757 = vmatprep.subr.bf16.mxu0 0
      %758 = vmatpush1.bf16.xpose.msra.mxu0 0
      %759 = vmatprep.subr.bf16.mxu0 0
      %760 = vmatpush1.bf16.xpose.msra.mxu0 0
      %761 = vmatprep.mubr.bf16.mxu0 0
      %762 = vmatmul.mubr.bf16.gmra.mrb[0].mxu0 %v718
      %v763 = vpop.f32.mrb[0].mxu0
      %v764 = vadd.f32 0.0, %v763
      %v765 = vpop.f32.mrb[0].mxu0
      %v766 = vpop.f32.mrb[0].mxu0
      %v767 = vadd.f32 0.0, %v766
      %v768 = vpop.f32.mrb[0].mxu0
      %769 = vmatprep.mubr.bf16.mxu0 0
      %770 = vmatmul.mubr.bf16.gmra.mrb[0].mxu0 %v721
      %v771 = vpop.f32.mrb[0].mxu0
      %v772 = vadd.f32 0.0, %v771
      %v773 = vpop.f32.mrb[0].mxu0
      %v774 = vpop.f32.mrb[0].mxu0
      %v775 = vadd.f32 0.0, %v774
      %v776 = vpop.f32.mrb[0].mxu0
      %777 = vdwg.mxu0
      %v778 = vmul.f32 %v764, 0.25
      %v779 = vmul.f32 %v767, 0.25
      %v780 = vmul.f32 %v772, 0.25
      %v781 = vmul.f32 %v775, 0.25
      %v782 = vadd.f32 %v778, %v583
      %v783 = vadd.f32 %v779, %v583
      %v784 = vadd.f32 %v780, %v583
      %v785 = vadd.f32 %v781, %v583
      %v786 = vsel %vm589, %v782, -inf
      %787 = vmax.xlane.f32.xlu0 %v786
      %v788 = vpop.xlane.xlu0 %787
      %v789 = vsel %vm589, %v783, -inf
      %790 = vmax.xlane.f32.xlu0 %v789
      %v791 = vpop.xlane.xlu0 %790
      %v792 = vsel %vm589, %v784, -inf
      %793 = vmax.xlane.f32.xlu0 %v792
      %v794 = vpop.xlane.xlu0 %793
      %v795 = vsel %vm599, %v785, -inf
      %796 = vmax.xlane.f32.xlu0 %v795
      %v797 = vpop.xlane.xlu0 %796
      %v798 = vsub.f32 %v782, %v788
      %v799 = vsub.f32 %v783, %v791
      %v800 = vsub.f32 %v784, %v794
      %v801 = vsub.f32 %v785, %v797
      %v802 = vmul.f32 %v798, 1.442695
      %v803 = vpow.pop %v802
      %v804 = vmul.f32 %v799, 1.442695
      %v805 = vpow.pop %v804
      %v806 = vmul.f32 %v800, 1.442695
      %v807 = vpow.pop %v806
      %v808 = vmul.f32 %v801, 1.442695
      %v809 = vpow.pop %v808
      %v810 = vsel %vm589, %v803, 0.0
      %811 = vadd.xlane.f32.xlu0 %v810
      %v812 = vpop.xlane.xlu0 %811
      %v813 = vsel %vm589, %v805, 0.0
      %814 = vadd.xlane.f32.xlu0 %v813
      %v815 = vpop.xlane.xlu0 %814
      %v816 = vsel %vm589, %v807, 0.0
      %817 = vadd.xlane.f32.xlu0 %v816
      %v818 = vpop.xlane.xlu0 %817
      %v819 = vsel %vm599, %v809, 0.0
      %820 = vadd.xlane.f32.xlu0 %v819
      %v821 = vpop.xlane.xlu0 %820
      %v822 = vrcp.pop %v812
      %v823 = vrcp.pop %v815
      %v824 = vrcp.pop %v818
      %v825 = vrcp.pop %v821
      %v826 = vmul.f32 %v803, %v822
      %v827 = vmul.f32 %v805, %v823
      %v828 = vmul.f32 %v807, %v824
      %v829 = vmul.f32 %v809, %v825
      %v830 = vpack.c.bf16 %v827, %v826
      %v831 = vpack.c.bf16 %v829, %v828
      %832 = vrot.lane.b32.xlu0 %v505, 48
      %v833 = vpop.permute.xlu0 %832
      %834 = vrot.lane.b32.xlu0 %v506, 48
      %v835 = vpop.permute.xlu0 %834
      %v838 = vsel %vm589, %v830, 0
      %v841 = vsel %vm589, %v831, 0
      %v844 = vand.u32 %v835, %v651
      %846 = vmatprep.subr.bf16.mxu0 0
      %847 = vmatpush1.bf16.msra.mxu0 %v833
      %848 = vmatprep.subr.bf16.mxu0 0
      %849 = vmatpush1.bf16.msra.mxu0 %v844
      %850 = vmatprep.subr.bf16.mxu0 0
      %851 = vmatpush1.bf16.msra.mxu0 0
      %852 = vmatprep.subr.bf16.mxu0 0
      %853 = vmatpush1.bf16.msra.mxu0 0
      %854 = vmatprep.subr.bf16.mxu0 0
      %855 = vmatpush1.bf16.msra.mxu0 0
      %856 = vmatprep.subr.bf16.mxu0 0
      %857 = vmatpush1.bf16.msra.mxu0 0
      %858 = vmatprep.subr.bf16.mxu0 0
      %859 = vmatpush1.bf16.msra.mxu0 0
      %860 = vmatprep.subr.bf16.mxu0 0
      %861 = vmatpush1.bf16.msra.mxu0 0
      %862 = vmatprep.subr.bf16.mxu0 0
      %863 = vmatpush1.bf16.msra.mxu0 0
      %864 = vmatprep.subr.bf16.mxu0 0
      %865 = vmatpush1.bf16.msra.mxu0 0
      %866 = vmatprep.subr.bf16.mxu0 0
      %867 = vmatpush1.bf16.msra.mxu0 0
      %868 = vmatprep.subr.bf16.mxu0 0
      %869 = vmatpush1.bf16.msra.mxu0 0
      %870 = vmatprep.subr.bf16.mxu0 0
      %871 = vmatpush1.bf16.msra.mxu0 0
      %872 = vmatprep.subr.bf16.mxu0 0
      %873 = vmatpush1.bf16.msra.mxu0 0
      %874 = vmatprep.subr.bf16.mxu0 0
      %875 = vmatpush1.bf16.msra.mxu0 0
      %876 = vmatprep.subr.bf16.mxu0 0
      %877 = vmatpush1.bf16.msra.mxu0 0
      %878 = vmatprep.mubr.bf16.mxu0 0
      %879 = vmatmul.mubr.bf16.gmra.mrb[0].mxu0 %v838
      %v880 = vpop.f32.mrb[0].mxu0
      %v881 = vadd.f32 0.0, %v880
      %v882 = vpop.f32.mrb[0].mxu0
      %v883 = vpop.f32.mrb[0].mxu0
      %v884 = vadd.f32 0.0, %v883
      %v885 = vpop.f32.mrb[0].mxu0
      %886 = vmatprep.mubr.bf16.mxu0 0
      %887 = vmatmul.mubr.bf16.gmra.mrb[0].mxu0 %v841
      %v888 = vpop.f32.mrb[0].mxu0
      %v889 = vadd.f32 0.0, %v888
      %v890 = vpop.f32.mrb[0].mxu0
      %v891 = vpop.f32.mrb[0].mxu0
      %v892 = vadd.f32 0.0, %v891
      %v893 = vpop.f32.mrb[0].mxu0
      %894 = vdwg.mxu0
      %v895 = vld [vmem:[%s4 + $0x10] sm:$0xff]
      %v896 = vld [vmem:[%s4 + $0x18] sm:$0xff]
      %v897 = vpack.c.bf16 %v884, %v881
      %v898 = vpack.c.bf16 %v892, %v889
      %v899 = vpack.c.bf16 %v896, %v895
      %v901 = vsel %vm513, %v897, 0
      %v904 = vsel %vm513, %v898, 0
      %906 = vmatprep.subr.bf16.mxu0 0
      %907 = vmatpush1.bf16.msra.mxu0 %v899
      %908 = vmatprep.subr.bf16.mxu0 0
      %909 = vmatpush1.bf16.msra.mxu0 0
      %910 = vmatprep.subr.bf16.mxu0 0
      %911 = vmatpush1.bf16.msra.mxu0 0
      %912 = vmatprep.subr.bf16.mxu0 0
      %913 = vmatpush1.bf16.msra.mxu0 0
      %914 = vmatprep.subr.bf16.mxu0 0
      %915 = vmatpush1.bf16.msra.mxu0 0
      %916 = vmatprep.subr.bf16.mxu0 0
      %917 = vmatpush1.bf16.msra.mxu0 0
      %918 = vmatprep.subr.bf16.mxu0 0
      %919 = vmatpush1.bf16.msra.mxu0 0
      %920 = vmatprep.subr.bf16.mxu0 0
      %921 = vmatpush1.bf16.msra.mxu0 0
      %922 = vmatprep.subr.bf16.mxu0 0
      %923 = vmatpush1.bf16.msra.mxu0 0
      %924 = vmatprep.subr.bf16.mxu0 0
      %925 = vmatpush1.bf16.msra.mxu0 0
      %926 = vmatprep.subr.bf16.mxu0 0
      %927 = vmatpush1.bf16.msra.mxu0 0
      %928 = vmatprep.subr.bf16.mxu0 0
      %929 = vmatpush1.bf16.msra.mxu0 0
      %930 = vmatprep.subr.bf16.mxu0 0
      %931 = vmatpush1.bf16.msra.mxu0 0
      %932 = vmatprep.subr.bf16.mxu0 0
      %933 = vmatpush1.bf16.msra.mxu0 0
      %934 = vmatprep.subr.bf16.mxu0 0
      %935 = vmatpush1.bf16.msra.mxu0 0
      %936 = vmatprep.subr.bf16.mxu0 0
      %937 = vmatpush1.bf16.msra.mxu0 0
      %938 = vmatprep.mubr.bf16.mxu0 0
      %939 = vmatmul.mubr.bf16.gmra.mrb[0].mxu0 %v901
      %v940 = vpop.f32.mrb[0].mxu0
      %v941 = vadd.f32 0.0, %v940
      %v942 = vpop.f32.mrb[0].mxu0
      %v943 = vpop.f32.mrb[0].mxu0
      %v944 = vadd.f32 0.0, %v943
      %v945 = vpop.f32.mrb[0].mxu0
      %946 = vmatprep.mubr.bf16.mxu0 0
      %947 = vmatmul.mubr.bf16.gmra.mrb[0].mxu0 %v904
      %v948 = vpop.f32.mrb[0].mxu0
      %v949 = vadd.f32 0.0, %v948
      %v950 = vpop.f32.mrb[0].mxu0
      %v951 = vpop.f32.mrb[0].mxu0
      %v952 = vadd.f32 0.0, %v951
      %v953 = vpop.f32.mrb[0].mxu0
      %954 = vdwg.mxu0
      %v956 = vsel %vm513, %v706, 0
      %v959 = vsel %vm513, %v707, 0
      %961 = vmatprep.subr.bf16.mxu0 0
      %962 = vmatpush1.bf16.msra.mxu0 %v708
      %963 = vmatprep.subr.bf16.mxu0 0
      %964 = vmatpush1.bf16.msra.mxu0 0
      %965 = vmatprep.subr.bf16.mxu0 0
      %966 = vmatpush1.bf16.msra.mxu0 0
      %967 = vmatprep.subr.bf16.mxu0 0
      %968 = vmatpush1.bf16.msra.mxu0 0
      %969 = vmatprep.subr.bf16.mxu0 0
      %970 = vmatpush1.bf16.msra.mxu0 0
      %971 = vmatprep.subr.bf16.mxu0 0
      %972 = vmatpush1.bf16.msra.mxu0 0
      %973 = vmatprep.subr.bf16.mxu0 0
      %974 = vmatpush1.bf16.msra.mxu0 0
      %975 = vmatprep.subr.bf16.mxu0 0
      %976 = vmatpush1.bf16.msra.mxu0 0
      %977 = vmatprep.subr.bf16.mxu0 0
      %978 = vmatpush1.bf16.msra.mxu0 0
      %979 = vmatprep.subr.bf16.mxu0 0
      %980 = vmatpush1.bf16.msra.mxu0 0
      %981 = vmatprep.subr.bf16.mxu0 0
      %982 = vmatpush1.bf16.msra.mxu0 0
      %983 = vmatprep.subr.bf16.mxu0 0
      %984 = vmatpush1.bf16.msra.mxu0 0
      %985 = vmatprep.subr.bf16.mxu0 0
      %986 = vmatpush1.bf16.msra.mxu0 0
      %987 = vmatprep.subr.bf16.mxu0 0
      %988 = vmatpush1.bf16.msra.mxu0 0
      %989 = vmatprep.subr.bf16.mxu0 0
      %990 = vmatpush1.bf16.msra.mxu0 0
      %991 = vmatprep.subr.bf16.mxu0 0
      %992 = vmatpush1.bf16.msra.mxu0 0
      %993 = vmatprep.mubr.bf16.mxu0 0
      %994 = vmatmul.mubr.bf16.gmra.mrb[0].mxu0 %v956
      %v995 = vpop.f32.mrb[0].mxu0
      %v996 = vadd.f32 %v941, %v995
      %v997 = vpop.f32.mrb[0].mxu0
      %v998 = vpop.f32.mrb[0].mxu0
      %v999 = vadd.f32 %v944, %v998
      %v1000 = vpop.f32.mrb[0].mxu0
      %1001 = vmatprep.mubr.bf16.mxu0 0
      %1002 = vmatmul.mubr.bf16.gmra.mrb[0].mxu0 %v959
      %v1003 = vpop.f32.mrb[0].mxu0
      %v1004 = vadd.f32 %v949, %v1003
      %v1005 = vpop.f32.mrb[0].mxu0
      %v1006 = vpop.f32.mrb[0].mxu0
      %v1007 = vadd.f32 %v952, %v1006
      %v1008 = vpop.f32.mrb[0].mxu0
      %1009 = vdwg.mxu0
      %v1010 = vld [vmem:[%s5] sm:$0x1]
      %v1012 = vlaneseq
      %v1013 = vshrl.u32 %v1012, 7
      %v1014 = vsub.s32 0, %v1013
      %v1015 = vrot.slane %v1010, %v1014
      %v1017 = vadd.f32 %v996, %v1015
      %v1018 = vadd.f32 %v999, %v1015
      %v1019 = vadd.f32 %v1004, %v1015
      %v1020 = vadd.f32 %v1007, %v1015
      %v1021 = vld [vmem:[%s6] sm:$0x3]
      %v1022 = vadd.f32 %v429, %v1017
      %v1023 = vadd.f32 %v430, %v1018
      %v1024 = vadd.f32 %v431, %v1019
      %v1025 = vadd.f32 %v432, %v1020
      %v1026 = vsel %vm449, %v1022, 0.0
      %1027 = vadd.xlane.f32.xlu0 %v1026
      %v1028 = vpop.xlane.xlu0 %1027
      %v1029 = vsel %vm449, %v1023, 0.0
      %1030 = vadd.xlane.f32.xlu0 %v1029
      %v1031 = vpop.xlane.xlu0 %1030
      %v1032 = vsel %vm449, %v1024, 0.0
      %1033 = vadd.xlane.f32.xlu0 %v1032
      %v1034 = vpop.xlane.xlu0 %1033
      %vm1035 = vcmask 260096
      %v1036 = vsel %vm1035, %v1025, 0.0
      %1037 = vadd.xlane.f32.xlu0 %v1036
      %v1038 = vpop.xlane.xlu0 %1037
      %v1039 = vrcp.pop 32.0
      %v1040 = vmul.f32 %v1028, %v1039
      %v1041 = vmul.f32 %v1031, %v1039
      %v1042 = vmul.f32 %v1034, %v1039
      %v1043 = vmul.f32 %v1038, %v1039
      %v1044 = vsub.f32 %v1022, %v1040
      %v1045 = vsub.f32 %v1023, %v1041
      %v1046 = vsub.f32 %v1024, %v1042
      %v1047 = vsub.f32 %v1025, %v1043
      %v1048 = vmul.f32 %v1044, %v1044
      %v1049 = vmul.f32 %v1045, %v1045
      %v1050 = vmul.f32 %v1046, %v1046
      %v1051 = vmul.f32 %v1047, %v1047
      %v1052 = vsel %vm449, %v1048, 0.0
      %1053 = vadd.xlane.f32.xlu0 %v1052
      %v1054 = vpop.xlane.xlu0 %1053
      %v1055 = vsel %vm449, %v1049, 0.0
      %1056 = vadd.xlane.f32.xlu0 %v1055
      %v1057 = vpop.xlane.xlu0 %1056
      %v1058 = vsel %vm449, %v1050, 0.0
      %1059 = vadd.xlane.f32.xlu0 %v1058
      %v1060 = vpop.xlane.xlu0 %1059
      %v1061 = vsel %vm1035, %v1051, 0.0
      %1062 = vadd.xlane.f32.xlu0 %v1061
      %v1063 = vpop.xlane.xlu0 %1062
      %v1064 = vmul.f32 %v1054, %v1039
      %v1065 = vmul.f32 %v1057, %v1039
      %v1066 = vmul.f32 %v1060, %v1039
      %v1067 = vmul.f32 %v1063, %v1039
      %v1068 = vadd.f32 %v1064, 1e-12
      %v1069 = vadd.f32 %v1065, 1e-12
      %v1070 = vadd.f32 %v1066, 1e-12
      %v1071 = vadd.f32 %v1067, 1e-12
      %v1072 = vrsqrt.pop %v1068
      %v1073 = vrsqrt.pop %v1069
      %v1074 = vrsqrt.pop %v1070
      %v1075 = vrsqrt.pop %v1071
      %v1076 = vmul.f32 %v1044, %v1072
      %v1077 = vmul.f32 %v1045, %v1073
      %v1078 = vmul.f32 %v1046, %v1074
      %v1079 = vmul.f32 %v1047, %v1075
      %v1080 = vlaneseq
      %v1081 = vshrl.u32 %v1080, 7
      %v1082 = vsub.s32 0, %v1081
      %v1083 = vrot.slane %v1021, %v1082
      %v1084 = vmul.f32 %v1076, %v1083
      %v1085 = vmul.f32 %v1077, %v1083
      %v1086 = vmul.f32 %v1078, %v1083
      %v1087 = vmul.f32 %v1079, %v1083
      %v1088 = vlaneseq
      %v1089 = vshrl.u32 %v1088, 7
      %v1090 = vsub.s32 1, %v1089
      %v1091 = vrot.slane %v1021, %v1090
      %v1092 = vadd.f32 %v1084, %v1091
      %v1093 = vadd.f32 %v1085, %v1091
      %v1094 = vadd.f32 %v1086, %v1091
      %v1095 = vadd.f32 %v1087, %v1091
      %v1096 = vld [vmem:[%s7] sm:$0xff]
      %v1097 = vld [vmem:[%s7 + $0x8] sm:$0xff]
      %v1098 = vld [vmem:[%s7 + $0x10] sm:$0xff]
      %v1099 = vld [vmem:[%s7 + $0x18] sm:$0xff]
      %v1100 = vpack.c.bf16 %v1093, %v1092
      %v1101 = vpack.c.bf16 %v1095, %v1094
      %v1102 = vpack.c.bf16 %v1097, %v1096
      %v1103 = vpack.c.bf16 %v1099, %v1098
      %v1104 = vld [vmem:[%s8] sm:$0x1]
      %v1106 = vlaneseq
      %v1107 = vshrl.u32 %v1106, 7
      %v1108 = vsub.s32 0, %v1107
      %v1109 = vrot.slane %v1104, %v1108
      %v1112 = vsel %vm449, %v1100, 0
      %v1115 = vsel %vm449, %v1101, 0
      %1117 = vmatprep.subr.bf16.mxu0 0
      %1118 = vmatpush1.bf16.msra.mxu0 %v1102
      %1119 = vmatprep.subr.bf16.mxu0 0
      %1120 = vmatpush1.bf16.msra.mxu0 %v1103
      %1121 = vmatprep.subr.bf16.mxu0 0
      %1122 = vmatpush1.bf16.msra.mxu0 0
      %1123 = vmatprep.subr.bf16.mxu0 0
      %1124 = vmatpush1.bf16.msra.mxu0 0
      %1125 = vmatprep.subr.bf16.mxu0 0
      %1126 = vmatpush1.bf16.msra.mxu0 0
      %1127 = vmatprep.subr.bf16.mxu0 0
      %1128 = vmatpush1.bf16.msra.mxu0 0
      %1129 = vmatprep.subr.bf16.mxu0 0
      %1130 = vmatpush1.bf16.msra.mxu0 0
      %1131 = vmatprep.subr.bf16.mxu0 0
      %1132 = vmatpush1.bf16.msra.mxu0 0
      %1133 = vmatprep.subr.bf16.mxu0 0
      %1134 = vmatpush1.bf16.msra.mxu0 0
      %1135 = vmatprep.subr.bf16.mxu0 0
      %1136 = vmatpush1.bf16.msra.mxu0 0
      %1137 = vmatprep.subr.bf16.mxu0 0
      %1138 = vmatpush1.bf16.msra.mxu0 0
      %1139 = vmatprep.subr.bf16.mxu0 0
      %1140 = vmatpush1.bf16.msra.mxu0 0
      %1141 = vmatprep.subr.bf16.mxu0 0
      %1142 = vmatpush1.bf16.msra.mxu0 0
      %1143 = vmatprep.subr.bf16.mxu0 0
      %1144 = vmatpush1.bf16.msra.mxu0 0
      %1145 = vmatprep.subr.bf16.mxu0 0
      %1146 = vmatpush1.bf16.msra.mxu0 0
      %1147 = vmatprep.subr.bf16.mxu0 0
      %1148 = vmatpush1.bf16.msra.mxu0 0
      %1149 = vmatprep.mubr.bf16.mxu0 0
      %1150 = vmatmul.mubr.bf16.gmra.mrb[0].mxu0 %v1112
      %v1151 = vpop.f32.mrb[0].mxu0
      %v1152 = vadd.f32 %v1109, %v1151
      %v1153 = vpop.f32.mrb[0].mxu0
      %v1154 = vpop.f32.mrb[0].mxu0
      %v1155 = vadd.f32 %v1109, %v1154
      %v1156 = vpop.f32.mrb[0].mxu0
      %1157 = vmatprep.mubr.bf16.mxu0 0
      %1158 = vmatmul.mubr.bf16.gmra.mrb[0].mxu0 %v1115
      %v1159 = vpop.f32.mrb[0].mxu0
      %v1160 = vadd.f32 %v1109, %v1159
      %v1161 = vpop.f32.mrb[0].mxu0
      %v1162 = vpop.f32.mrb[0].mxu0
      %v1163 = vadd.f32 %v1109, %v1162
      %v1164 = vpop.f32.mrb[0].mxu0
      %1165 = vdwg.mxu0
      %v1166 = vmul.f32 %v1152, 0.5
      %v1167 = vmul.f32 %v1155, 0.5
      %v1168 = vmul.f32 %v1160, 0.5
      %v1169 = vmul.f32 %v1163, 0.5
      %v1170 = vmul.f32 %v1152, 0.044715
      %v1171 = vmul.f32 %v1155, 0.044715
      %v1172 = vmul.f32 %v1160, 0.044715
      %v1173 = vmul.f32 %v1163, 0.044715
      %v1174 = vmul.f32 %v1170, %v1152
      %v1175 = vmul.f32 %v1171, %v1155
      %v1176 = vmul.f32 %v1172, %v1160
      %v1177 = vmul.f32 %v1173, %v1163
      %v1178 = vmul.f32 %v1174, %v1152
      %v1179 = vmul.f32 %v1175, %v1155
      %v1180 = vmul.f32 %v1176, %v1160
      %v1181 = vmul.f32 %v1177, %v1163
      %v1182 = vadd.f32 %v1152, %v1178
      %v1183 = vadd.f32 %v1155, %v1179
      %v1184 = vadd.f32 %v1160, %v1180
      %v1185 = vadd.f32 %v1163, %v1181
      %v1186 = vmul.f32 %v1182, 0.7978846
      %v1187 = vmul.f32 %v1183, 0.7978846
      %v1188 = vmul.f32 %v1184, 0.7978846
      %v1189 = vmul.f32 %v1185, 0.7978846
      %v1190 = vtanh.pop %v1186
      %v1191 = vtanh.pop %v1187
      %v1192 = vtanh.pop %v1188
      %v1193 = vtanh.pop %v1189
      %v1194 = vadd.f32 %v1190, 1.0
      %v1195 = vadd.f32 %v1191, 1.0
      %v1196 = vadd.f32 %v1192, 1.0
      %v1197 = vadd.f32 %v1193, 1.0
      %v1198 = vmul.f32 %v1166, %v1194
      %v1199 = vmul.f32 %v1167, %v1195
      %v1200 = vmul.f32 %v1168, %v1196
      %v1201 = vmul.f32 %v1169, %v1197
      %v1202 = vld [vmem:[%s9] sm:$0xff]
      %v1203 = vld [vmem:[%s9 + $0x8] sm:$0xff]
      %v1204 = vld [vmem:[%s9 + $0x10] sm:$0xff]
      %v1205 = vld [vmem:[%s9 + $0x18] sm:$0xff]
      %v1206 = vld [vmem:[%s9 + $0x20] sm:$0xff]
      %v1207 = vld [vmem:[%s9 + $0x28] sm:$0xff]
      %v1208 = vld [vmem:[%s9 + $0x30] sm:$0xff]
      %v1209 = vld [vmem:[%s9 + $0x38] sm:$0xff]
      %v1210 = vpack.c.bf16 %v1199, %v1198
      %v1211 = vpack.c.bf16 %v1201, %v1200
      %v1212 = vpack.c.bf16 %v1203, %v1202
      %v1213 = vpack.c.bf16 %v1205, %v1204
      %v1214 = vpack.c.bf16 %v1207, %v1206
      %v1215 = vpack.c.bf16 %v1209, %v1208
      %v1216 = vld [vmem:[%s10] sm:$0x1]
      %v1218 = vlaneseq
      %v1219 = vshrl.u32 %v1218, 7
      %v1220 = vsub.s32 0, %v1219
      %v1221 = vrot.slane %v1216, %v1220
      %vm1223 = vcmask 523264
      %v1225 = vsel %vm1223, %v1210, 0
      %v1228 = vsel %vm1223, %v1211, 0
      %1230 = vmatprep.subr.bf16.mxu0 0
      %1231 = vmatpush1.bf16.msra.mxu0 %v1212
      %1232 = vmatprep.subr.bf16.mxu0 0
      %1233 = vmatpush1.bf16.msra.mxu0 %v1213
      %1234 = vmatprep.subr.bf16.mxu0 0
      %1235 = vmatpush1.bf16.msra.mxu0 %v1214
      %1236 = vmatprep.subr.bf16.mxu0 0
      %1237 = vmatpush1.bf16.msra.mxu0 %v1215
      %1238 = vmatprep.subr.bf16.mxu0 0
      %1239 = vmatpush1.bf16.msra.mxu0 0
      %1240 = vmatprep.subr.bf16.mxu0 0
      %1241 = vmatpush1.bf16.msra.mxu0 0
      %1242 = vmatprep.subr.bf16.mxu0 0
      %1243 = vmatpush1.bf16.msra.mxu0 0
      %1244 = vmatprep.subr.bf16.mxu0 0
      %1245 = vmatpush1.bf16.msra.mxu0 0
      %1246 = vmatprep.subr.bf16.mxu0 0
      %1247 = vmatpush1.bf16.msra.mxu0 0
      %1248 = vmatprep.subr.bf16.mxu0 0
      %1249 = vmatpush1.bf16.msra.mxu0 0
      %1250 = vmatprep.subr.bf16.mxu0 0
      %1251 = vmatpush1.bf16.msra.mxu0 0
      %1252 = vmatprep.subr.bf16.mxu0 0
      %1253 = vmatpush1.bf16.msra.mxu0 0
      %1254 = vmatprep.subr.bf16.mxu0 0
      %1255 = vmatpush1.bf16.msra.mxu0 0
      %1256 = vmatprep.subr.bf16.mxu0 0
      %1257 = vmatpush1.bf16.msra.mxu0 0
      %1258 = vmatprep.subr.bf16.mxu0 0
      %1259 = vmatpush1.bf16.msra.mxu0 0
      %1260 = vmatprep.subr.bf16.mxu0 0
      %1261 = vmatpush1.bf16.msra.mxu0 0
      %1262 = vmatprep.mubr.bf16.mxu0 0
      %1263 = vmatmul.mubr.bf16.gmra.mrb[0].mxu0 %v1225
      %v1264 = vpop.f32.mrb[0].mxu0
      %v1265 = vadd.f32 %v1221, %v1264
      %v1266 = vpop.f32.mrb[0].mxu0
      %v1267 = vpop.f32.mrb[0].mxu0
      %v1268 = vadd.f32 %v1221, %v1267
      %v1269 = vpop.f32.mrb[0].mxu0
      %1270 = vmatprep.mubr.bf16.mxu0 0
      %1271 = vmatmul.mubr.bf16.gmra.mrb[0].mxu0 %v1228
      %v1272 = vpop.f32.mrb[0].mxu0
      %v1273 = vadd.f32 %v1221, %v1272
      %v1274 = vpop.f32.mrb[0].mxu0
      %v1275 = vpop.f32.mrb[0].mxu0
      %v1276 = vadd.f32 %v1221, %v1275
      %v1277 = vpop.f32.mrb[0].mxu0
      %1278 = vdwg.mxu0
      %v1279 = vld [vmem:[%s11] sm:$0x3]
      %v1280 = vadd.f32 %v1092, %v1265
      %v1281 = vadd.f32 %v1093, %v1268
      %v1282 = vadd.f32 %v1094, %v1273
      %v1283 = vadd.f32 %v1095, %v1276
      %v1284 = vsel %vm449, %v1280, 0.0
      %1285 = vadd.xlane.f32.xlu0 %v1284
      %v1286 = vpop.xlane.xlu0 %1285
      %v1287 = vsel %vm449, %v1281, 0.0
      %1288 = vadd.xlane.f32.xlu0 %v1287
      %v1289 = vpop.xlane.xlu0 %1288
      %v1290 = vsel %vm449, %v1282, 0.0
      %1291 = vadd.xlane.f32.xlu0 %v1290
      %v1292 = vpop.xlane.xlu0 %1291
      %v1293 = vsel %vm1035, %v1283, 0.0
      %1294 = vadd.xlane.f32.xlu0 %v1293
      %v1295 = vpop.xlane.xlu0 %1294
      %v1296 = vmul.f32 %v1286, %v1039
      %v1297 = vmul.f32 %v1289, %v1039
      %v1298 = vmul.f32 %v1292, %v1039
      %v1299 = vmul.f32 %v1295, %v1039
      %v1300 = vsub.f32 %v1280, %v1296
      %v1301 = vsub.f32 %v1281, %v1297
      %v1302 = vsub.f32 %v1282, %v1298
      %v1303 = vsub.f32 %v1283, %v1299
      %v1304 = vmul.f32 %v1300, %v1300
      %v1305 = vmul.f32 %v1301, %v1301
      %v1306 = vmul.f32 %v1302, %v1302
      %v1307 = vmul.f32 %v1303, %v1303
      %v1308 = vsel %vm449, %v1304, 0.0
      %1309 = vadd.xlane.f32.xlu0 %v1308
      %v1310 = vpop.xlane.xlu0 %1309
      %v1311 = vsel %vm449, %v1305, 0.0
      %1312 = vadd.xlane.f32.xlu0 %v1311
      %v1313 = vpop.xlane.xlu0 %1312
      %v1314 = vsel %vm449, %v1306, 0.0
      %1315 = vadd.xlane.f32.xlu0 %v1314
      %v1316 = vpop.xlane.xlu0 %1315
      %v1317 = vsel %vm1035, %v1307, 0.0
      %1318 = vadd.xlane.f32.xlu0 %v1317
      %v1319 = vpop.xlane.xlu0 %1318
      %v1320 = vmul.f32 %v1310, %v1039
      %v1321 = vmul.f32 %v1313, %v1039
      %v1322 = vmul.f32 %v1316, %v1039
      %v1323 = vmul.f32 %v1319, %v1039
      %v1324 = vadd.f32 %v1320, 1e-12
      %v1325 = vadd.f32 %v1321, 1e-12
      %v1326 = vadd.f32 %v1322, 1e-12
      %v1327 = vadd.f32 %v1323, 1e-12
      %v1328 = vrsqrt.pop %v1324
      %v1329 = vrsqrt.pop %v1325
      %v1330 = vrsqrt.pop %v1326
      %v1331 = vrsqrt.pop %v1327
      %v1332 = vmul.f32 %v1300, %v1328
      %v1333 = vmul.f32 %v1301, %v1329
      %v1334 = vmul.f32 %v1302, %v1330
      %v1335 = vmul.f32 %v1303, %v1331
      %v1336 = vlaneseq
      %v1337 = vshrl.u32 %v1336, 7
      %v1338 = vsub.s32 0, %v1337
      %v1339 = vrot.slane %v1279, %v1338
      %v1340 = vmul.f32 %v1332, %v1339
      %v1341 = vmul.f32 %v1333, %v1339
      %v1342 = vmul.f32 %v1334, %v1339
      %v1343 = vmul.f32 %v1335, %v1339
      %v1344 = vlaneseq
      %v1345 = vshrl.u32 %v1344, 7
      %v1346 = vsub.s32 1, %v1345
      %v1347 = vrot.slane %v1279, %v1346
      %v1348 = vadd.f32 %v1340, %v1347
      %v1349 = vadd.f32 %v1341, %v1347
      %v1350 = vadd.f32 %v1342, %v1347
      %v1351 = vadd.f32 %v1343, %v1347
      %1352 = vst.msk [vmem:[%s427] sm:$0xff] %vm449, %v1348
      %1353 = vst.msk [vmem:[%s427 + $0x8] sm:$0xff] %vm449, %v1349
      %1354 = vst.msk [vmem:[%s427 + $0x10] sm:$0xff] %vm449, %v1350
      %1355 = vst.msk [vmem:[%s427 + $0x18] sm:$0x7f] %vm1035, %v1351
      %p1356 = scmp.lt.s32.totalorder %s23, 3
      %s1357 = scalar_select %p1356, %s23, 3
      %s1358 = smul.addr %s1357, 4
      %s1359 = smul.addr %s1358, 8
      %s1360 = scalar_lea.vmem %s12, %s1359
      // Predicated region
      $region69: #{_lambda_.4} parent=67 // pred_check
        %p1361 = pneg %p303
      $region70: #{_lambda_.4} parent=67 // pred_check_branch
        %1363 = sbr.rel (%p1361) target = $region72
      $region71: #{_lambda_.4} parent=67 // pred_region
        _
      $region72: #{_lambda_.4} parent=67 // pred_fallthru
        _
    $region68: #{_lambda_.4} parent=5 // pred_fallthru
      _
    %p1364 = scmp.le.s32.totalorder 2, %s18
    // Predicated region
    $region73: #{_lambda_.4} parent=5 // pred_check
      %p1365 = pneg %p1364
    $region74: #{_lambda_.4} parent=5 // pred_check_branch
      %1367 = sbr.rel (%p1365) target = $region76
    $region75: #{_lambda_.4} parent=5 // pred_region
      %s1368 = ssub.s32 %s18, 2
      // Predicated region
      $region77: #{_lambda_.4} parent=75 // pred_check
        %p1369 = pneg %p309
      $region78: #{_lambda_.4} parent=75 // pred_check_branch
        %1371 = sbr.rel (%p1369) target = $region80
      $region79: #{_lambda_.4} parent=75 // pred_region
        %p1372 = scmp.lt.s32.totalorder %s24, 3
        %s1373 = scalar_select %p1372, %s24, 3
        %s1374 = smul.addr %s1373, 4
        %s1375 = smul.addr %s1374, 8
        %s1376 = scalar_lea.vmem %s12, %s1375
      $region80: #{_lambda_.4} parent=75 // pred_fallthru
        _
    $region76: #{_lambda_.4} parent=5 // pred_fallthru
      _
  $region6: #{_lambda_.4} parent=0 // loop_footer
    %s22 = sadd.s32 1, %s18
  $region7: #{_lambda_.4} parent=0 // loop_footer_branch
    %17 = sbr.rel target = $region3
  $region8: #{_lambda_.4} parent=0 // loop_exit
    _

</llo_original>
